<compile_context>
chip_gen: v7x
topology: tpu7x:2x2x1
jax: 0.10.0
libtpu: 0.0.40
codegen_flags: <defaults>
</compile_context>

<pallas_src>
import jax
import jax.numpy as jnp
from jax.experimental import pallas as pl
from jax.experimental.pallas import tpu as pltpu


_SUB = 16  # bf16 sublane pack


def _round_up(v, m):
    return (v + m - 1) // m * m


def _make_kernel(H, W, Cin_p, Cout_p, Cout, negative_slope=0.2, eps=1e-5):
    Hp, Wp = H + 2, W + 2
    P = Hp * Wp                      # padded spatial extent (lane axis of the slab)
    L = (H - 1) * Wp + W             # contiguous lane span covering all output pixels
    base = Wp + 1                    # lane index of output pixel (0, 0) in padded coords
    inv_n = 1.0 / float(H * W)       # InstanceNorm averages over valid pixels only
    offs = [(t // 3) * Wp + (t % 3) for t in range(9)]   # static 3x3 tap offsets

    def kernel(x_ref, w1_ref, w2_ref, m_ref, o_ref, im1_ref, buf_ref, im2_ref):
        mask = m_ref[...]            # (1, L) f32: 1.0 on valid image columns, 0.0 on pad cols

        def inorm_lrelu(y):
            # Masked one-pass stats (sum & sum-of-squares), biased variance,
            # eps = 1e-5 -> matches nn.InstanceNorm2d defaults.  Variance is
            # clamped at 0 to guard against f32 cancellation going negative.
            ym = y * mask
            s = jnp.sum(ym, axis=1, keepdims=True)          # (Cout_p, 1)
            ss = jnp.sum(ym * y, axis=1, keepdims=True)     # sum(y^2 * mask)
            mean = s * inv_n
            var = jnp.maximum(ss * inv_n - mean * mean, 0.0)
            yn = (y - mean) * jax.lax.rsqrt(var + eps)
            return jnp.where(yn >= 0.0, yn, negative_slope * yn)

        # ---- conv1 (3x3, pad 1, no bias): bf16 im2col then one K=9*Cin_p matmul ----
        for t, off in enumerate(offs):                       # static tap loop
            # 16-aligned sublane row blocks, bf16 straight from the input slab.
            im1_ref[t * Cin_p:(t + 1) * Cin_p, :] = x_ref[0, :, off:off + L]
        y1 = jnp.dot(w1_ref[...], im1_ref[...],
                     preferred_element_type=jnp.float32)     # (Cout_p, L) f32
        y1 = inorm_lrelu(y1)
        # TODO(synk): nn.Dropout2d implemented with eval-mode semantics (identity).

        # Place masked y1 into a zero-padded bf16 slab so conv2 sees zero padding.
        # Only the 2*(Wp+1) halo lanes are cleared (no full-slab zero fill); the
        # `* mask` zeroes the left/right padding lanes inside the span -- conv2's
        # zero padding depends on it, do not remove.
        buf_ref[:, 0:base] = jnp.zeros((Cout_p, base), jnp.bfloat16)
        buf_ref[:, base + L:P] = jnp.zeros((Cout_p, P - base - L), jnp.bfloat16)
        buf_ref[:, base:base + L] = (y1 * mask).astype(jnp.bfloat16)

        # ---- conv2 -> InstanceNorm -> LeakyReLU(0.2) ----
        for t, off in enumerate(offs):
            im2_ref[t * Cout_p:(t + 1) * Cout_p, :] = buf_ref[:, off:off + L]
        y2 = jnp.dot(w2_ref[...], im2_ref[...],
                     preferred_element_type=jnp.float32)     # (Cout_p, L) f32
        y2 = inorm_lrelu(y2)
        # TODO(synk): second nn.Dropout2d also identity (eval mode).

        # De-padded store: H row stores of width W into the flattened (Cout, H*W)
        # output block.  This removes the wrapper-side pad/reshape/slice HBM
        # passes; the wrapper reshape to (N, Cout, H, W) is a free bitcast.
        for r in range(H):
            o_ref[0, :, r * W:(r + 1) * W] = (
                y2[:Cout, r * Wp:r * Wp + W].astype(o_ref.dtype))

    return kernel


def conv_block_pallas(x_nchw, w1_oihw, w2_oihw):
    N, Cin, H, W = x_nchw.shape
    Cout = w1_oihw.shape[0]
    Cin_p, Cout_p = _round_up(Cin, _SUB), _round_up(Cout, _SUB)
    Hp, Wp = H + 2, W + 2
    P = Hp * Wp
    L = (H - 1) * Wp + W
    base = Wp + 1

    # NCHW -> zero-padded (channels to sublane pack, spatial by 1), channel-major,
    # flattened spatial, bf16: (N, Cin_p, P).  One fused XLA pass; bf16 halves the
    # HBM->VMEM DMA and is what the MXU consumes anyway.
    xp = jnp.pad(x_nchw, ((0, 0), (0, Cin_p - Cin), (1, 1), (1, 1)))
    xf = xp.reshape(N, Cin_p, P).astype(jnp.bfloat16)

    # PyTorch OIHW conv weights -> (Cout_p, 9*C_p), column index = tap*C_p + cin.
    # Padded channels carry zero weights, so they contribute nothing and the
    # padded output channels are exact zeros (InstanceNorm of zeros stays zero).
    w1p = jnp.pad(w1_oihw, ((0, Cout_p - Cout), (0, Cin_p - Cin), (0, 0), (0, 0)))
    w2p = jnp.pad(w2_oihw, ((0, Cout_p - Cout), (0, Cout_p - Cout), (0, 0), (0, 0)))
    w1k = jnp.transpose(w1p, (0, 2, 3, 1)).reshape(Cout_p, 9 * Cin_p).astype(jnp.bfloat16)
    w2k = jnp.transpose(w2p, (0, 2, 3, 1)).reshape(Cout_p, 9 * Cout_p).astype(jnp.bfloat16)

    # Valid-column mask over the L-span (hoisted out of the kernel, tiny DMA).
    cols = (jnp.arange(L, dtype=jnp.int32) + base) % Wp
    mask = ((cols >= 1) & (cols <= W)).astype(jnp.float32).reshape(1, L)

    kernel = _make_kernel(H, W, Cin_p, Cout_p, Cout)
    out_flat = pl.pallas_call(
        kernel,
        out_shape=jax.ShapeDtypeStruct((N, Cout, H * W), x_nchw.dtype),
        grid=(N,),
        in_specs=[
            pl.BlockSpec((1, Cin_p, P), lambda b: (b, 0, 0)),
            pl.BlockSpec((Cout_p, 9 * Cin_p), lambda b: (0, 0)),
            pl.BlockSpec((Cout_p, 9 * Cout_p), lambda b: (0, 0)),
            pl.BlockSpec((1, L), lambda b: (0, 0)),
        ],
        out_specs=pl.BlockSpec((1, Cout, H * W), lambda b: (b, 0, 0)),
        scratch_shapes=[
            pltpu.VMEM((9 * Cin_p, L), jnp.bfloat16),    # conv1 im2col staging (bf16)
            pltpu.VMEM((Cout_p, P), jnp.bfloat16),       # zero-padded y1 slab (bf16)
            pltpu.VMEM((9 * Cout_p, L), jnp.bfloat16),   # conv2 im2col staging (bf16)
        ],
        compiler_params=pltpu.CompilerParams(
            dimension_semantics=("parallel",),           # N images -> both TCs on v7x/v5p
            vmem_limit_bytes=32 * 1024 * 1024),
    )(xf, w1k, w2k, mask)

    # Contiguous reshape only (free bitcast); all de-padding happened in-kernel.
    return out_flat.reshape(N, Cout, H, W)


def conv_block_ref(x, w1, w2, eps=1e-5, slope=0.2, bf16_matmul=True):
    """Pure-JAX reference for the PyTorch ConvBlock in eval mode.

    With bf16_matmul=True the conv operands are cast to bf16 with f32
    accumulation, mirroring the TPU-MXU-native precision the Pallas kernel uses
    (the full-f32 PyTorch result differs from this by ~bf16 matmul rounding).
    """
    def conv(xc, w):
        if bf16_matmul:
            xc = xc.astype(jnp.bfloat16)
            w = w.astype(jnp.bfloat16)
        return jax.lax.conv_general_dilated(
            xc, w, window_strides=(1, 1), padding=((1, 1), (1, 1)),
            dimension_numbers=("NCHW", "OIHW", "NCHW"),
            preferred_element_type=jnp.float32)

    def in_lrelu(y):
        mean = jnp.mean(y, axis=(2, 3), keepdims=True)
        var = jnp.mean((y - mean) ** 2, axis=(2, 3), keepdims=True)
        yn = (y - mean) * jax.lax.rsqrt(var + eps)
        return jnp.where(yn >= 0.0, yn, slope * yn)

    y = in_lrelu(conv(x, w1))
    y = in_lrelu(conv(y, w2))
    return y


if __name__ == "__main__":
    N, Cin, Cout, H, W = 2, 4, 8, 16, 16
    drop_prob = 0.1   # Dropout2d is identity at inference

    key = jax.random.PRNGKey(0)
    kx, k1, k2 = jax.random.split(key, 3)
    x = jax.random.normal(kx, (N, Cin, H, W), jnp.float32)
    # deterministic synthetic Conv2d weights (PyTorch OIHW layout, bias=False)
    w1 = jax.random.normal(k1, (Cout, Cin, 3, 3), jnp.float32) * (1.0 / (Cin * 9) ** 0.5)
    w2 = jax.random.normal(k2, (Cout, Cout, 3, 3), jnp.float32) * (1.0 / (Cout * 9) ** 0.5)

    out = jax.jit(conv_block_pallas)(x, w1, w2)
    out = jax.block_until_ready(out)

    ref = conv_block_ref(x, w1, w2, bf16_matmul=True)   # MXU-precision reference
    assert out.shape == (N, Cout, H, W), out.shape
    max_err = float(jnp.max(jnp.abs(out - ref)))
    assert jnp.allclose(out, ref, atol=2e-3, rtol=2e-3), max_err
    print("KERNEL_OK")
</pallas_src>

<mosaic_0001>
module attributes {stable_mosaic.version = 11 : i64} {
  func.func @kernel(%arg0: i32, %arg1: memref<1x16x324xbf16, #tpu.memory_space<vmem>>, %arg2: memref<16x144xbf16, #tpu.memory_space<vmem>>, %arg3: memref<16x144xbf16, #tpu.memory_space<vmem>>, %arg4: memref<1x286xf32, #tpu.memory_space<vmem>>, %arg5: memref<1x8x256xf32, #tpu.memory_space<vmem>>, %arg6: memref<144x286xbf16, #tpu.memory_space<vmem>>, %arg7: memref<16x324xbf16, #tpu.memory_space<vmem>>, %arg8: memref<144x286xbf16, #tpu.memory_space<vmem>>) attributes {dimension_semantics = [#tpu.dimension_semantics<parallel>], iteration_bounds = array<i64: 2>, scalar_prefetch = 0 : i64, scratch_operands = 3 : i64, tpu.core_type = #tpu.core_type<tc>, window_params = [{transform_indices = @transform_0, window_bounds = array<i64: 1, 16, 324>}, {pipeline_mode = #tpu.pipeline_mode<synchronous>, transform_indices = @transform_1, window_bounds = array<i64: 16, 144>}, {pipeline_mode = #tpu.pipeline_mode<synchronous>, transform_indices = @transform_2, window_bounds = array<i64: 16, 144>}, {pipeline_mode = #tpu.pipeline_mode<synchronous>, transform_indices = @transform_3, window_bounds = array<i64: 1, 286>}, {transform_indices = @transform_4, window_bounds = array<i64: 1, 8, 256>}]} {
    %c0 = arith.constant 0 : index
    %c0_0 = arith.constant 0 : index
    %0 = vector.load %arg4[%c0, %c0_0] : memref<1x286xf32, #tpu.memory_space<vmem>>, vector<1x286xf32>
    %c0_1 = arith.constant 0 : index
    %c0_2 = arith.constant 0 : index
    %c0_3 = arith.constant 0 : index
    %1 = vector.load %arg1[%c0_1, %c0_2, %c0_3] : memref<1x16x324xbf16, #tpu.memory_space<vmem>>, vector<1x16x286xbf16>
    %2 = vector.shape_cast %1 : vector<1x16x286xbf16> to vector<16x286xbf16>
    %c0_4 = arith.constant 0 : index
    %c0_5 = arith.constant 0 : index
    %3 = vector.load %arg6[%c0_4, %c0_5] : memref<144x286xbf16, #tpu.memory_space<vmem>>, vector<16x286xbf16>
    tpu.vector_store %arg6[%c0_4, %c0_5], %2 {strides = array<i32>} : memref<144x286xbf16, #tpu.memory_space<vmem>>, vector<16x286xbf16>,
    %c0_6 = arith.constant 0 : index
    %c0_7 = arith.constant 0 : index
    %c1 = arith.constant 1 : index
    %4 = vector.load %arg1[%c0_6, %c0_7, %c1] : memref<1x16x324xbf16, #tpu.memory_space<vmem>>, vector<1x16x286xbf16>
    %5 = vector.shape_cast %4 : vector<1x16x286xbf16> to vector<16x286xbf16>
    %c16 = arith.constant 16 : index
    %c0_8 = arith.constant 0 : index
    %6 = vector.load %arg6[%c16, %c0_8] : memref<144x286xbf16, #tpu.memory_space<vmem>>, vector<16x286xbf16>
    tpu.vector_store %arg6[%c16, %c0_8], %5 {strides = array<i32>} : memref<144x286xbf16, #tpu.memory_space<vmem>>, vector<16x286xbf16>,
    %c0_9 = arith.constant 0 : index
    %c0_10 = arith.constant 0 : index
    %c2 = arith.constant 2 : index
    %7 = vector.load %arg1[%c0_9, %c0_10, %c2] : memref<1x16x324xbf16, #tpu.memory_space<vmem>>, vector<1x16x286xbf16>
    %8 = vector.shape_cast %7 : vector<1x16x286xbf16> to vector<16x286xbf16>
    %c32 = arith.constant 32 : index
    %c0_11 = arith.constant 0 : index
    %9 = vector.load %arg6[%c32, %c0_11] : memref<144x286xbf16, #tpu.memory_space<vmem>>, vector<16x286xbf16>
    tpu.vector_store %arg6[%c32, %c0_11], %8 {strides = array<i32>} : memref<144x286xbf16, #tpu.memory_space<vmem>>, vector<16x286xbf16>,
    %c0_12 = arith.constant 0 : index
    %c0_13 = arith.constant 0 : index
    %c18 = arith.constant 18 : index
    %10 = vector.load %arg1[%c0_12, %c0_13, %c18] : memref<1x16x324xbf16, #tpu.memory_space<vmem>>, vector<1x16x286xbf16>
    %11 = vector.shape_cast %10 : vector<1x16x286xbf16> to vector<16x286xbf16>
    %c48 = arith.constant 48 : index
    %c0_14 = arith.constant 0 : index
    %12 = vector.load %arg6[%c48, %c0_14] : memref<144x286xbf16, #tpu.memory_space<vmem>>, vector<16x286xbf16>
    tpu.vector_store %arg6[%c48, %c0_14], %11 {strides = array<i32>} : memref<144x286xbf16, #tpu.memory_space<vmem>>, vector<16x286xbf16>,
    %c0_15 = arith.constant 0 : index
    %c0_16 = arith.constant 0 : index
    %c19 = arith.constant 19 : index
    %13 = vector.load %arg1[%c0_15, %c0_16, %c19] : memref<1x16x324xbf16, #tpu.memory_space<vmem>>, vector<1x16x286xbf16>
    %14 = vector.shape_cast %13 : vector<1x16x286xbf16> to vector<16x286xbf16>
    %c64 = arith.constant 64 : index
    %c0_17 = arith.constant 0 : index
    %15 = vector.load %arg6[%c64, %c0_17] : memref<144x286xbf16, #tpu.memory_space<vmem>>, vector<16x286xbf16>
    tpu.vector_store %arg6[%c64, %c0_17], %14 {strides = array<i32>} : memref<144x286xbf16, #tpu.memory_space<vmem>>, vector<16x286xbf16>,
    %c0_18 = arith.constant 0 : index
    %c0_19 = arith.constant 0 : index
    %c20 = arith.constant 20 : index
    %16 = vector.load %arg1[%c0_18, %c0_19, %c20] : memref<1x16x324xbf16, #tpu.memory_space<vmem>>, vector<1x16x286xbf16>
    %17 = vector.shape_cast %16 : vector<1x16x286xbf16> to vector<16x286xbf16>
    %c80 = arith.constant 80 : index
    %c0_20 = arith.constant 0 : index
    %18 = vector.load %arg6[%c80, %c0_20] : memref<144x286xbf16, #tpu.memory_space<vmem>>, vector<16x286xbf16>
    tpu.vector_store %arg6[%c80, %c0_20], %17 {strides = array<i32>} : memref<144x286xbf16, #tpu.memory_space<vmem>>, vector<16x286xbf16>,
    %c0_21 = arith.constant 0 : index
    %c0_22 = arith.constant 0 : index
    %c36 = arith.constant 36 : index
    %19 = vector.load %arg1[%c0_21, %c0_22, %c36] : memref<1x16x324xbf16, #tpu.memory_space<vmem>>, vector<1x16x286xbf16>
    %20 = vector.shape_cast %19 : vector<1x16x286xbf16> to vector<16x286xbf16>
    %c96 = arith.constant 96 : index
    %c0_23 = arith.constant 0 : index
    %21 = vector.load %arg6[%c96, %c0_23] : memref<144x286xbf16, #tpu.memory_space<vmem>>, vector<16x286xbf16>
    tpu.vector_store %arg6[%c96, %c0_23], %20 {strides = array<i32>} : memref<144x286xbf16, #tpu.memory_space<vmem>>, vector<16x286xbf16>,
    %c0_24 = arith.constant 0 : index
    %c0_25 = arith.constant 0 : index
    %c37 = arith.constant 37 : index
    %22 = vector.load %arg1[%c0_24, %c0_25, %c37] : memref<1x16x324xbf16, #tpu.memory_space<vmem>>, vector<1x16x286xbf16>
    %23 = vector.shape_cast %22 : vector<1x16x286xbf16> to vector<16x286xbf16>
    %c112 = arith.constant 112 : index
    %c0_26 = arith.constant 0 : index
    %24 = vector.load %arg6[%c112, %c0_26] : memref<144x286xbf16, #tpu.memory_space<vmem>>, vector<16x286xbf16>
    tpu.vector_store %arg6[%c112, %c0_26], %23 {strides = array<i32>} : memref<144x286xbf16, #tpu.memory_space<vmem>>, vector<16x286xbf16>,
    %c0_27 = arith.constant 0 : index
    %c0_28 = arith.constant 0 : index
    %c38 = arith.constant 38 : index
    %25 = vector.load %arg1[%c0_27, %c0_28, %c38] : memref<1x16x324xbf16, #tpu.memory_space<vmem>>, vector<1x16x286xbf16>
    %26 = vector.shape_cast %25 : vector<1x16x286xbf16> to vector<16x286xbf16>
    %c128 = arith.constant 128 : index
    %c0_29 = arith.constant 0 : index
    %27 = vector.load %arg6[%c128, %c0_29] : memref<144x286xbf16, #tpu.memory_space<vmem>>, vector<16x286xbf16>
    tpu.vector_store %arg6[%c128, %c0_29], %26 {strides = array<i32>} : memref<144x286xbf16, #tpu.memory_space<vmem>>, vector<16x286xbf16>,
    %c0_30 = arith.constant 0 : index
    %c0_31 = arith.constant 0 : index
    %28 = vector.load %arg2[%c0_30, %c0_31] : memref<16x144xbf16, #tpu.memory_space<vmem>>, vector<16x144xbf16>
    %c0_32 = arith.constant 0 : index
    %c0_33 = arith.constant 0 : index
    %29 = vector.load %arg6[%c0_32, %c0_33] : memref<144x286xbf16, #tpu.memory_space<vmem>>, vector<144x286xbf16>
    %cst = arith.constant dense<0.000000e+00> : vector<16x286xf32>
    %30 = tpu.matmul %28, %29, %cst {dimension_numbers = #tpu.dot_dimension_numbers<[1], [0], [0], [1], [0, 0, 1, 1], [], []>} : vector<16x144xbf16>, vector<144x286xbf16>, vector<16x286xf32> -> vector<16x286xf32>
    %31 = vector.broadcast %0 : vector<1x286xf32> to vector<16x286xf32>
    %32 = arith.mulf %30, %31 : vector<16x286xf32>
    %cst_34 = arith.constant dense<0.000000e+00> : vector<16xf32>
    %33 = vector.multi_reduction <add>, %32, %cst_34 [1] : vector<16x286xf32> to vector<16xf32>
    %34 = vector.shape_cast %33 : vector<16xf32> to vector<16x1xf32>
    %35 = arith.mulf %32, %30 : vector<16x286xf32>
    %cst_35 = arith.constant dense<0.000000e+00> : vector<16xf32>
    %36 = vector.multi_reduction <add>, %35, %cst_35 [1] : vector<16x286xf32> to vector<16xf32>
    %37 = vector.shape_cast %36 : vector<16xf32> to vector<16x1xf32>
    %cst_36 = arith.constant 3.906250e-03 : f32
    %38 = vector.broadcast %cst_36 : f32 to vector<16x1xf32>
    %39 = arith.mulf %34, %38 : vector<16x1xf32>
    %cst_37 = arith.constant 3.906250e-03 : f32
    %40 = vector.broadcast %cst_37 : f32 to vector<16x1xf32>
    %41 = arith.mulf %37, %40 : vector<16x1xf32>
    %42 = arith.mulf %39, %39 : vector<16x1xf32>
    %43 = arith.subf %41, %42 : vector<16x1xf32>
    %cst_38 = arith.constant 0.000000e+00 : f32
    %44 = vector.broadcast %cst_38 : f32 to vector<16x1xf32>
    %45 = arith.maximumf %43, %44 : vector<16x1xf32>
    %46 = vector.broadcast %39 : vector<16x1xf32> to vector<16x286xf32>
    %47 = arith.subf %30, %46 : vector<16x286xf32>
    %cst_39 = arith.constant 9.99999974E-6 : f32
    %48 = vector.broadcast %cst_39 : f32 to vector<16x1xf32>
    %49 = arith.addf %45, %48 : vector<16x1xf32>
    %50 = math.rsqrt %49 : vector<16x1xf32>
    %51 = vector.broadcast %50 : vector<16x1xf32> to vector<16x286xf32>
    %52 = arith.mulf %47, %51 : vector<16x286xf32>
    %cst_40 = arith.constant 0.000000e+00 : f32
    %53 = vector.broadcast %cst_40 : f32 to vector<16x286xf32>
    %54 = arith.cmpf oge, %52, %53 : vector<16x286xf32>
    %cst_41 = arith.constant 2.000000e-01 : f32
    %55 = vector.broadcast %cst_41 : f32 to vector<16x286xf32>
    %56 = arith.mulf %55, %52 : vector<16x286xf32>
    %57 = arith.select %54, %52, %56 : vector<16x286xi1>, vector<16x286xf32>
    %cst_42 = arith.constant 0.000000e+00 : bf16
    %58 = vector.broadcast %cst_42 : bf16 to vector<16x19xbf16>
    %c0_43 = arith.constant 0 : index
    %c0_44 = arith.constant 0 : index
    %59 = vector.load %arg7[%c0_43, %c0_44] : memref<16x324xbf16, #tpu.memory_space<vmem>>, vector<16x19xbf16>
    tpu.vector_store %arg7[%c0_43, %c0_44], %58 {strides = array<i32>} : memref<16x324xbf16, #tpu.memory_space<vmem>>, vector<16x19xbf16>,
    %cst_45 = arith.constant 0.000000e+00 : bf16
    %60 = vector.broadcast %cst_45 : bf16 to vector<16x19xbf16>
    %c0_46 = arith.constant 0 : index
    %c305 = arith.constant 305 : index
    %61 = vector.load %arg7[%c0_46, %c305] : memref<16x324xbf16, #tpu.memory_space<vmem>>, vector<16x19xbf16>
    tpu.vector_store %arg7[%c0_46, %c305], %60 {strides = array<i32>} : memref<16x324xbf16, #tpu.memory_space<vmem>>, vector<16x19xbf16>,
    %62 = vector.broadcast %0 : vector<1x286xf32> to vector<16x286xf32>
    %63 = arith.mulf %57, %62 : vector<16x286xf32>
    %64 = arith.truncf %63 : vector<16x286xf32> to vector<16x286xbf16>
    %c0_47 = arith.constant 0 : index
    %c19_48 = arith.constant 19 : index
    %65 = vector.load %arg7[%c0_47, %c19_48] : memref<16x324xbf16, #tpu.memory_space<vmem>>, vector<16x286xbf16>
    tpu.vector_store %arg7[%c0_47, %c19_48], %64 {strides = array<i32>} : memref<16x324xbf16, #tpu.memory_space<vmem>>, vector<16x286xbf16>,
    %c0_49 = arith.constant 0 : index
    %c0_50 = arith.constant 0 : index
    %66 = vector.load %arg7[%c0_49, %c0_50] : memref<16x324xbf16, #tpu.memory_space<vmem>>, vector<16x286xbf16>
    %c0_51 = arith.constant 0 : index
    %c0_52 = arith.constant 0 : index
    %67 = vector.load %arg8[%c0_51, %c0_52] : memref<144x286xbf16, #tpu.memory_space<vmem>>, vector<16x286xbf16>
    tpu.vector_store %arg8[%c0_51, %c0_52], %66 {strides = array<i32>} : memref<144x286xbf16, #tpu.memory_space<vmem>>, vector<16x286xbf16>,
    %c0_53 = arith.constant 0 : index
    %c1_54 = arith.constant 1 : index
    %68 = vector.load %arg7[%c0_53, %c1_54] : memref<16x324xbf16, #tpu.memory_space<vmem>>, vector<16x286xbf16>
    %c16_55 = arith.constant 16 : index
    %c0_56 = arith.constant 0 : index
    %69 = vector.load %arg8[%c16_55, %c0_56] : memref<144x286xbf16, #tpu.memory_space<vmem>>, vector<16x286xbf16>
    tpu.vector_store %arg8[%c16_55, %c0_56], %68 {strides = array<i32>} : memref<144x286xbf16, #tpu.memory_space<vmem>>, vector<16x286xbf16>,
    %c0_57 = arith.constant 0 : index
    %c2_58 = arith.constant 2 : index
    %70 = vector.load %arg7[%c0_57, %c2_58] : memref<16x324xbf16, #tpu.memory_space<vmem>>, vector<16x286xbf16>
    %c32_59 = arith.constant 32 : index
    %c0_60 = arith.constant 0 : index
    %71 = vector.load %arg8[%c32_59, %c0_60] : memref<144x286xbf16, #tpu.memory_space<vmem>>, vector<16x286xbf16>
    tpu.vector_store %arg8[%c32_59, %c0_60], %70 {strides = array<i32>} : memref<144x286xbf16, #tpu.memory_space<vmem>>, vector<16x286xbf16>,
    %c0_61 = arith.constant 0 : index
    %c18_62 = arith.constant 18 : index
    %72 = vector.load %arg7[%c0_61, %c18_62] : memref<16x324xbf16, #tpu.memory_space<vmem>>, vector<16x286xbf16>
    %c48_63 = arith.constant 48 : index
    %c0_64 = arith.constant 0 : index
    %73 = vector.load %arg8[%c48_63, %c0_64] : memref<144x286xbf16, #tpu.memory_space<vmem>>, vector<16x286xbf16>
    tpu.vector_store %arg8[%c48_63, %c0_64], %72 {strides = array<i32>} : memref<144x286xbf16, #tpu.memory_space<vmem>>, vector<16x286xbf16>,
    %c0_65 = arith.constant 0 : index
    %c19_66 = arith.constant 19 : index
    %74 = vector.load %arg7[%c0_65, %c19_66] : memref<16x324xbf16, #tpu.memory_space<vmem>>, vector<16x286xbf16>
    %c64_67 = arith.constant 64 : index
    %c0_68 = arith.constant 0 : index
    %75 = vector.load %arg8[%c64_67, %c0_68] : memref<144x286xbf16, #tpu.memory_space<vmem>>, vector<16x286xbf16>
    tpu.vector_store %arg8[%c64_67, %c0_68], %74 {strides = array<i32>} : memref<144x286xbf16, #tpu.memory_space<vmem>>, vector<16x286xbf16>,
    %c0_69 = arith.constant 0 : index
    %c20_70 = arith.constant 20 : index
    %76 = vector.load %arg7[%c0_69, %c20_70] : memref<16x324xbf16, #tpu.memory_space<vmem>>, vector<16x286xbf16>
    %c80_71 = arith.constant 80 : index
    %c0_72 = arith.constant 0 : index
    %77 = vector.load %arg8[%c80_71, %c0_72] : memref<144x286xbf16, #tpu.memory_space<vmem>>, vector<16x286xbf16>
    tpu.vector_store %arg8[%c80_71, %c0_72], %76 {strides = array<i32>} : memref<144x286xbf16, #tpu.memory_space<vmem>>, vector<16x286xbf16>,
    %c0_73 = arith.constant 0 : index
    %c36_74 = arith.constant 36 : index
    %78 = vector.load %arg7[%c0_73, %c36_74] : memref<16x324xbf16, #tpu.memory_space<vmem>>, vector<16x286xbf16>
    %c96_75 = arith.constant 96 : index
    %c0_76 = arith.constant 0 : index
    %79 = vector.load %arg8[%c96_75, %c0_76] : memref<144x286xbf16, #tpu.memory_space<vmem>>, vector<16x286xbf16>
    tpu.vector_store %arg8[%c96_75, %c0_76], %78 {strides = array<i32>} : memref<144x286xbf16, #tpu.memory_space<vmem>>, vector<16x286xbf16>,
    %c0_77 = arith.constant 0 : index
    %c37_78 = arith.constant 37 : index
    %80 = vector.load %arg7[%c0_77, %c37_78] : memref<16x324xbf16, #tpu.memory_space<vmem>>, vector<16x286xbf16>
    %c112_79 = arith.constant 112 : index
    %c0_80 = arith.constant 0 : index
    %81 = vector.load %arg8[%c112_79, %c0_80] : memref<144x286xbf16, #tpu.memory_space<vmem>>, vector<16x286xbf16>
    tpu.vector_store %arg8[%c112_79, %c0_80], %80 {strides = array<i32>} : memref<144x286xbf16, #tpu.memory_space<vmem>>, vector<16x286xbf16>,
    %c0_81 = arith.constant 0 : index
    %c38_82 = arith.constant 38 : index
    %82 = vector.load %arg7[%c0_81, %c38_82] : memref<16x324xbf16, #tpu.memory_space<vmem>>, vector<16x286xbf16>
    %c128_83 = arith.constant 128 : index
    %c0_84 = arith.constant 0 : index
    %83 = vector.load %arg8[%c128_83, %c0_84] : memref<144x286xbf16, #tpu.memory_space<vmem>>, vector<16x286xbf16>
    tpu.vector_store %arg8[%c128_83, %c0_84], %82 {strides = array<i32>} : memref<144x286xbf16, #tpu.memory_space<vmem>>, vector<16x286xbf16>,
    %c0_85 = arith.constant 0 : index
    %c0_86 = arith.constant 0 : index
    %84 = vector.load %arg3[%c0_85, %c0_86] : memref<16x144xbf16, #tpu.memory_space<vmem>>, vector<16x144xbf16>
    %c0_87 = arith.constant 0 : index
    %c0_88 = arith.constant 0 : index
    %85 = vector.load %arg8[%c0_87, %c0_88] : memref<144x286xbf16, #tpu.memory_space<vmem>>, vector<144x286xbf16>
    %cst_89 = arith.constant dense<0.000000e+00> : vector<16x286xf32>
    %86 = tpu.matmul %84, %85, %cst_89 {dimension_numbers = #tpu.dot_dimension_numbers<[1], [0], [0], [1], [0, 0, 1, 1], [], []>} : vector<16x144xbf16>, vector<144x286xbf16>, vector<16x286xf32> -> vector<16x286xf32>
    %87 = vector.broadcast %0 : vector<1x286xf32> to vector<16x286xf32>
    %88 = arith.mulf %86, %87 : vector<16x286xf32>
    %cst_90 = arith.constant dense<0.000000e+00> : vector<16xf32>
    %89 = vector.multi_reduction <add>, %88, %cst_90 [1] : vector<16x286xf32> to vector<16xf32>
    %90 = vector.shape_cast %89 : vector<16xf32> to vector<16x1xf32>
    %91 = arith.mulf %88, %86 : vector<16x286xf32>
    %cst_91 = arith.constant dense<0.000000e+00> : vector<16xf32>
    %92 = vector.multi_reduction <add>, %91, %cst_91 [1] : vector<16x286xf32> to vector<16xf32>
    %93 = vector.shape_cast %92 : vector<16xf32> to vector<16x1xf32>
    %cst_92 = arith.constant 3.906250e-03 : f32
    %94 = vector.broadcast %cst_92 : f32 to vector<16x1xf32>
    %95 = arith.mulf %90, %94 : vector<16x1xf32>
    %cst_93 = arith.constant 3.906250e-03 : f32
    %96 = vector.broadcast %cst_93 : f32 to vector<16x1xf32>
    %97 = arith.mulf %93, %96 : vector<16x1xf32>
    %98 = arith.mulf %95, %95 : vector<16x1xf32>
    %99 = arith.subf %97, %98 : vector<16x1xf32>
    %cst_94 = arith.constant 0.000000e+00 : f32
    %100 = vector.broadcast %cst_94 : f32 to vector<16x1xf32>
    %101 = arith.maximumf %99, %100 : vector<16x1xf32>
    %102 = vector.broadcast %95 : vector<16x1xf32> to vector<16x286xf32>
    %103 = arith.subf %86, %102 : vector<16x286xf32>
    %cst_95 = arith.constant 9.99999974E-6 : f32
    %104 = vector.broadcast %cst_95 : f32 to vector<16x1xf32>
    %105 = arith.addf %101, %104 : vector<16x1xf32>
    %106 = math.rsqrt %105 : vector<16x1xf32>
    %107 = vector.broadcast %106 : vector<16x1xf32> to vector<16x286xf32>
    %108 = arith.mulf %103, %107 : vector<16x286xf32>
    %cst_96 = arith.constant 0.000000e+00 : f32
    %109 = vector.broadcast %cst_96 : f32 to vector<16x286xf32>
    %110 = arith.cmpf oge, %108, %109 : vector<16x286xf32>
    %cst_97 = arith.constant 2.000000e-01 : f32
    %111 = vector.broadcast %cst_97 : f32 to vector<16x286xf32>
    %112 = arith.mulf %111, %108 : vector<16x286xf32>
    %113 = arith.select %110, %108, %112 : vector<16x286xi1>, vector<16x286xf32>
    %114 = vector.extract_strided_slice %113 {offsets = [0, 0], sizes = [8, 16], strides = [1, 1]} : vector<16x286xf32> to vector<8x16xf32>
    %c0_98 = arith.constant 0 : index
    %c0_99 = arith.constant 0 : index
    %c0_100 = arith.constant 0 : index
    %115 = vector.load %arg5[%c0_98, %c0_99, %c0_100] : memref<1x8x256xf32, #tpu.memory_space<vmem>>, vector<1x8x16xf32>
    %116 = vector.shape_cast %115 : vector<1x8x16xf32> to vector<8x16xf32>
    %117 = vector.shape_cast %114 : vector<8x16xf32> to vector<1x8x16xf32>
    tpu.vector_store %arg5[%c0_98, %c0_99, %c0_100], %117 {strides = array<i32>} : memref<1x8x256xf32, #tpu.memory_space<vmem>>, vector<1x8x16xf32>,
    %118 = vector.extract_strided_slice %113 {offsets = [0, 18], sizes = [8, 16], strides = [1, 1]} : vector<16x286xf32> to vector<8x16xf32>
    %c0_101 = arith.constant 0 : index
    %c0_102 = arith.constant 0 : index
    %c16_103 = arith.constant 16 : index
    %119 = vector.load %arg5[%c0_101, %c0_102, %c16_103] : memref<1x8x256xf32, #tpu.memory_space<vmem>>, vector<1x8x16xf32>
    %120 = vector.shape_cast %119 : vector<1x8x16xf32> to vector<8x16xf32>
    %121 = vector.shape_cast %118 : vector<8x16xf32> to vector<1x8x16xf32>
    tpu.vector_store %arg5[%c0_101, %c0_102, %c16_103], %121 {strides = array<i32>} : memref<1x8x256xf32, #tpu.memory_space<vmem>>, vector<1x8x16xf32>,
    %122 = vector.extract_strided_slice %113 {offsets = [0, 36], sizes = [8, 16], strides = [1, 1]} : vector<16x286xf32> to vector<8x16xf32>
    %c0_104 = arith.constant 0 : index
    %c0_105 = arith.constant 0 : index
    %c32_106 = arith.constant 32 : index
    %123 = vector.load %arg5[%c0_104, %c0_105, %c32_106] : memref<1x8x256xf32, #tpu.memory_space<vmem>>, vector<1x8x16xf32>
    %124 = vector.shape_cast %123 : vector<1x8x16xf32> to vector<8x16xf32>
    %125 = vector.shape_cast %122 : vector<8x16xf32> to vector<1x8x16xf32>
    tpu.vector_store %arg5[%c0_104, %c0_105, %c32_106], %125 {strides = array<i32>} : memref<1x8x256xf32, #tpu.memory_space<vmem>>, vector<1x8x16xf32>,
    %126 = vector.extract_strided_slice %113 {offsets = [0, 54], sizes = [8, 16], strides = [1, 1]} : vector<16x286xf32> to vector<8x16xf32>
    %c0_107 = arith.constant 0 : index
    %c0_108 = arith.constant 0 : index
    %c48_109 = arith.constant 48 : index
    %127 = vector.load %arg5[%c0_107, %c0_108, %c48_109] : memref<1x8x256xf32, #tpu.memory_space<vmem>>, vector<1x8x16xf32>
    %128 = vector.shape_cast %127 : vector<1x8x16xf32> to vector<8x16xf32>
    %129 = vector.shape_cast %126 : vector<8x16xf32> to vector<1x8x16xf32>
    tpu.vector_store %arg5[%c0_107, %c0_108, %c48_109], %129 {strides = array<i32>} : memref<1x8x256xf32, #tpu.memory_space<vmem>>, vector<1x8x16xf32>,
    %130 = vector.extract_strided_slice %113 {offsets = [0, 72], sizes = [8, 16], strides = [1, 1]} : vector<16x286xf32> to vector<8x16xf32>
    %c0_110 = arith.constant 0 : index
    %c0_111 = arith.constant 0 : index
    %c64_112 = arith.constant 64 : index
    %131 = vector.load %arg5[%c0_110, %c0_111, %c64_112] : memref<1x8x256xf32, #tpu.memory_space<vmem>>, vector<1x8x16xf32>
    %132 = vector.shape_cast %131 : vector<1x8x16xf32> to vector<8x16xf32>
    %133 = vector.shape_cast %130 : vector<8x16xf32> to vector<1x8x16xf32>
    tpu.vector_store %arg5[%c0_110, %c0_111, %c64_112], %133 {strides = array<i32>} : memref<1x8x256xf32, #tpu.memory_space<vmem>>, vector<1x8x16xf32>,
    %134 = vector.extract_strided_slice %113 {offsets = [0, 90], sizes = [8, 16], strides = [1, 1]} : vector<16x286xf32> to vector<8x16xf32>
    %c0_113 = arith.constant 0 : index
    %c0_114 = arith.constant 0 : index
    %c80_115 = arith.constant 80 : index
    %135 = vector.load %arg5[%c0_113, %c0_114, %c80_115] : memref<1x8x256xf32, #tpu.memory_space<vmem>>, vector<1x8x16xf32>
    %136 = vector.shape_cast %135 : vector<1x8x16xf32> to vector<8x16xf32>
    %137 = vector.shape_cast %134 : vector<8x16xf32> to vector<1x8x16xf32>
    tpu.vector_store %arg5[%c0_113, %c0_114, %c80_115], %137 {strides = array<i32>} : memref<1x8x256xf32, #tpu.memory_space<vmem>>, vector<1x8x16xf32>,
    %138 = vector.extract_strided_slice %113 {offsets = [0, 108], sizes = [8, 16], strides = [1, 1]} : vector<16x286xf32> to vector<8x16xf32>
    %c0_116 = arith.constant 0 : index
    %c0_117 = arith.constant 0 : index
    %c96_118 = arith.constant 96 : index
    %139 = vector.load %arg5[%c0_116, %c0_117, %c96_118] : memref<1x8x256xf32, #tpu.memory_space<vmem>>, vector<1x8x16xf32>
    %140 = vector.shape_cast %139 : vector<1x8x16xf32> to vector<8x16xf32>
    %141 = vector.shape_cast %138 : vector<8x16xf32> to vector<1x8x16xf32>
    tpu.vector_store %arg5[%c0_116, %c0_117, %c96_118], %141 {strides = array<i32>} : memref<1x8x256xf32, #tpu.memory_space<vmem>>, vector<1x8x16xf32>,
    %142 = vector.extract_strided_slice %113 {offsets = [0, 126], sizes = [8, 16], strides = [1, 1]} : vector<16x286xf32> to vector<8x16xf32>
    %c0_119 = arith.constant 0 : index
    %c0_120 = arith.constant 0 : index
    %c112_121 = arith.constant 112 : index
    %143 = vector.load %arg5[%c0_119, %c0_120, %c112_121] : memref<1x8x256xf32, #tpu.memory_space<vmem>>, vector<1x8x16xf32>
    %144 = vector.shape_cast %143 : vector<1x8x16xf32> to vector<8x16xf32>
    %145 = vector.shape_cast %142 : vector<8x16xf32> to vector<1x8x16xf32>
    tpu.vector_store %arg5[%c0_119, %c0_120, %c112_121], %145 {strides = array<i32>} : memref<1x8x256xf32, #tpu.memory_space<vmem>>, vector<1x8x16xf32>,
    %146 = vector.extract_strided_slice %113 {offsets = [0, 144], sizes = [8, 16], strides = [1, 1]} : vector<16x286xf32> to vector<8x16xf32>
    %c0_122 = arith.constant 0 : index
    %c0_123 = arith.constant 0 : index
    %c128_124 = arith.constant 128 : index
    %147 = vector.load %arg5[%c0_122, %c0_123, %c128_124] : memref<1x8x256xf32, #tpu.memory_space<vmem>>, vector<1x8x16xf32>
    %148 = vector.shape_cast %147 : vector<1x8x16xf32> to vector<8x16xf32>
    %149 = vector.shape_cast %146 : vector<8x16xf32> to vector<1x8x16xf32>
    tpu.vector_store %arg5[%c0_122, %c0_123, %c128_124], %149 {strides = array<i32>} : memref<1x8x256xf32, #tpu.memory_space<vmem>>, vector<1x8x16xf32>,
    %150 = vector.extract_strided_slice %113 {offsets = [0, 162], sizes = [8, 16], strides = [1, 1]} : vector<16x286xf32> to vector<8x16xf32>
    %c0_125 = arith.constant 0 : index
    %c0_126 = arith.constant 0 : index
    %c144 = arith.constant 144 : index
    %151 = vector.load %arg5[%c0_125, %c0_126, %c144] : memref<1x8x256xf32, #tpu.memory_space<vmem>>, vector<1x8x16xf32>
    %152 = vector.shape_cast %151 : vector<1x8x16xf32> to vector<8x16xf32>
    %153 = vector.shape_cast %150 : vector<8x16xf32> to vector<1x8x16xf32>
    tpu.vector_store %arg5[%c0_125, %c0_126, %c144], %153 {strides = array<i32>} : memref<1x8x256xf32, #tpu.memory_space<vmem>>, vector<1x8x16xf32>,
    %154 = vector.extract_strided_slice %113 {offsets = [0, 180], sizes = [8, 16], strides = [1, 1]} : vector<16x286xf32> to vector<8x16xf32>
    %c0_127 = arith.constant 0 : index
    %c0_128 = arith.constant 0 : index
    %c160 = arith.constant 160 : index
    %155 = vector.load %arg5[%c0_127, %c0_128, %c160] : memref<1x8x256xf32, #tpu.memory_space<vmem>>, vector<1x8x16xf32>
    %156 = vector.shape_cast %155 : vector<1x8x16xf32> to vector<8x16xf32>
    %157 = vector.shape_cast %154 : vector<8x16xf32> to vector<1x8x16xf32>
    tpu.vector_store %arg5[%c0_127, %c0_128, %c160], %157 {strides = array<i32>} : memref<1x8x256xf32, #tpu.memory_space<vmem>>, vector<1x8x16xf32>,
    %158 = vector.extract_strided_slice %113 {offsets = [0, 198], sizes = [8, 16], strides = [1, 1]} : vector<16x286xf32> to vector<8x16xf32>
    %c0_129 = arith.constant 0 : index
    %c0_130 = arith.constant 0 : index
    %c176 = arith.constant 176 : index
    %159 = vector.load %arg5[%c0_129, %c0_130, %c176] : memref<1x8x256xf32, #tpu.memory_space<vmem>>, vector<1x8x16xf32>
    %160 = vector.shape_cast %159 : vector<1x8x16xf32> to vector<8x16xf32>
    %161 = vector.shape_cast %158 : vector<8x16xf32> to vector<1x8x16xf32>
    tpu.vector_store %arg5[%c0_129, %c0_130, %c176], %161 {strides = array<i32>} : memref<1x8x256xf32, #tpu.memory_space<vmem>>, vector<1x8x16xf32>,
    %162 = vector.extract_strided_slice %113 {offsets = [0, 216], sizes = [8, 16], strides = [1, 1]} : vector<16x286xf32> to vector<8x16xf32>
    %c0_131 = arith.constant 0 : index
    %c0_132 = arith.constant 0 : index
    %c192 = arith.constant 192 : index
    %163 = vector.load %arg5[%c0_131, %c0_132, %c192] : memref<1x8x256xf32, #tpu.memory_space<vmem>>, vector<1x8x16xf32>
    %164 = vector.shape_cast %163 : vector<1x8x16xf32> to vector<8x16xf32>
    %165 = vector.shape_cast %162 : vector<8x16xf32> to vector<1x8x16xf32>
    tpu.vector_store %arg5[%c0_131, %c0_132, %c192], %165 {strides = array<i32>} : memref<1x8x256xf32, #tpu.memory_space<vmem>>, vector<1x8x16xf32>,
    %166 = vector.extract_strided_slice %113 {offsets = [0, 234], sizes = [8, 16], strides = [1, 1]} : vector<16x286xf32> to vector<8x16xf32>
    %c0_133 = arith.constant 0 : index
    %c0_134 = arith.constant 0 : index
    %c208 = arith.constant 208 : index
    %167 = vector.load %arg5[%c0_133, %c0_134, %c208] : memref<1x8x256xf32, #tpu.memory_space<vmem>>, vector<1x8x16xf32>
    %168 = vector.shape_cast %167 : vector<1x8x16xf32> to vector<8x16xf32>
    %169 = vector.shape_cast %166 : vector<8x16xf32> to vector<1x8x16xf32>
    tpu.vector_store %arg5[%c0_133, %c0_134, %c208], %169 {strides = array<i32>} : memref<1x8x256xf32, #tpu.memory_space<vmem>>, vector<1x8x16xf32>,
    %170 = vector.extract_strided_slice %113 {offsets = [0, 252], sizes = [8, 16], strides = [1, 1]} : vector<16x286xf32> to vector<8x16xf32>
    %c0_135 = arith.constant 0 : index
    %c0_136 = arith.constant 0 : index
    %c224 = arith.constant 224 : index
    %171 = vector.load %arg5[%c0_135, %c0_136, %c224] : memref<1x8x256xf32, #tpu.memory_space<vmem>>, vector<1x8x16xf32>
    %172 = vector.shape_cast %171 : vector<1x8x16xf32> to vector<8x16xf32>
    %173 = vector.shape_cast %170 : vector<8x16xf32> to vector<1x8x16xf32>
    tpu.vector_store %arg5[%c0_135, %c0_136, %c224], %173 {strides = array<i32>} : memref<1x8x256xf32, #tpu.memory_space<vmem>>, vector<1x8x16xf32>,
    %174 = vector.extract_strided_slice %113 {offsets = [0, 270], sizes = [8, 16], strides = [1, 1]} : vector<16x286xf32> to vector<8x16xf32>
    %c0_137 = arith.constant 0 : index
    %c0_138 = arith.constant 0 : index
    %c240 = arith.constant 240 : index
    %175 = vector.load %arg5[%c0_137, %c0_138, %c240] : memref<1x8x256xf32, #tpu.memory_space<vmem>>, vector<1x8x16xf32>
    %176 = vector.shape_cast %175 : vector<1x8x16xf32> to vector<8x16xf32>
    %177 = vector.shape_cast %174 : vector<8x16xf32> to vector<1x8x16xf32>
    tpu.vector_store %arg5[%c0_137, %c0_138, %c240], %177 {strides = array<i32>} : memref<1x8x256xf32, #tpu.memory_space<vmem>>, vector<1x8x16xf32>,
    return
  }
  func.func @transform_0(%arg0: i32) -> (i32, i32, i32) {
    %c0_i32 = arith.constant 0 : i32
    %c0_i32_0 = arith.constant 0 : i32
    %c0_i32_1 = arith.constant 0 : i32
    return %arg0, %c0_i32, %c0_i32_0 : i32, i32, i32
  }
  func.func @transform_1(%arg0: i32) -> (i32, i32) {
    %c0_i32 = arith.constant 0 : i32
    %c0_i32_0 = arith.constant 0 : i32
    %c0_i32_1 = arith.constant 0 : i32
    return %c0_i32, %c0_i32_0 : i32, i32
  }
  func.func @transform_2(%arg0: i32) -> (i32, i32) {
    %c0_i32 = arith.constant 0 : i32
    %c0_i32_0 = arith.constant 0 : i32
    %c0_i32_1 = arith.constant 0 : i32
    return %c0_i32, %c0_i32_0 : i32, i32
  }
  func.func @transform_3(%arg0: i32) -> (i32, i32) {
    %c0_i32 = arith.constant 0 : i32
    %c0_i32_0 = arith.constant 0 : i32
    %c0_i32_1 = arith.constant 0 : i32
    return %c0_i32, %c0_i32_0 : i32, i32
  }
  func.func @transform_4(%arg0: i32) -> (i32, i32, i32) {
    %c0_i32 = arith.constant 0 : i32
    %c0_i32_0 = arith.constant 0 : i32
    %c0_i32_1 = arith.constant 0 : i32
    return %arg0, %c0_i32, %c0_i32_0 : i32, i32, i32
  }
}

</mosaic_0001>

<llo_original>
// kernel: conv_block_pallas.1
$region0: #{conv_block_pallas.1}
  #allocation0 [shape = 'u32[]', space=smem, size = 0x4, offset = 0x4, fixed_abs, tag = 'smem constant byte address 0x4 - core index']
  #allocation1 [shape = 'u32[144,128]{1,0:T(1,128)}', space=vmem, size = 0x12000, scoped, tag = 'internal scratch']
  #allocation2 [shape = 'bf16[144,286]{1,0:T(16,128)(2,1)}', space=vmem, size = 0x1b000, scoped, tag = 'scratch operand']
  #allocation3 [shape = 'bf16[16,324]{1,0:T(16,128)(2,1)}', space=vmem, size = 0x3000, scoped, tag = 'scratch operand']
  #allocation4 [shape = 'bf16[144,286]{1,0:T(16,128)(2,1)}', space=vmem, size = 0x1b000, scoped, tag = 'scratch operand']
  %s0 = inlined_call_operand.vmem [shape: bf16[2,16,324], index: 0, kind: input, shape index: {}]
  %s1 = inlined_call_operand.vmem [shape: bf16[16,144], index: 1, kind: input, shape index: {}]
  %s2 = inlined_call_operand.vmem [shape: bf16[16,144], index: 2, kind: input, shape index: {}]
  %s3 = inlined_call_operand.vmem [shape: f32[1,286], index: 3, kind: input, shape index: {}]
  %s4 = inlined_call_operand.vmem [shape: f32[2,8,256], index: 4, kind: output, shape index: {}]
  %s5 = sld [smem:[#allocation0]]
  $region49: #{conv_block_pallas.1} parent=0
    _
  %s7 = ssub.s32 1, %s5
  %s8 = scalar_select 0, %s7, %s5
  loop: start=0, step=1, limit=4
  $region2: #{conv_block_pallas.1} parent=0 // loop_pre_header
    _
  $region3: #{conv_block_pallas.1} parent=0 // loop_header
    %s10 = sphi 0, %s14
    %p11 = scmp.ge.s32.totalorder %s10, 4
    %s20 = sphi 0, %s22
    %s23 = sphi 0, %s20
    %s24 = sphi 0, %s23
    %s40 = sphi 0, %s24
    %s44 = sphi 0, %s44
    %s46 = sphi 0, %s44
    %s47 = sphi 0, %s46
    %s61 = sphi 0, %s47
    %s65 = sphi 0, %s65
    %s67 = sphi 0, %s65
    %s68 = sphi 0, %s67
    %s82 = sphi 0, %s68
    %s86 = sphi 0, %s86
    %s88 = sphi 0, %s86
    %s89 = sphi 0, %s88
    %s103 = sphi 0, %s89
    %s109 = sphi 0, %s111
    %s112 = sphi 0, %s109
    %s113 = sphi 0, %s112
    %s129 = sphi 0, %s113
  $region4: #{conv_block_pallas.1} parent=0 // loop_header_branch
    %13 = sbr.rel (%p11) target = $region8
  $region5: #{conv_block_pallas.1} parent=0 // loop_body
    %s15 = ssub.s32 %s10, 1
    %s16 = ssub.s32 %s10, 2
    %s17 = sadd.s32 %s10, 1
    %s18 = ssub.s32 %s10, %s17
    %p19 = scmp.eq.s32.totalorder %s18, 0
    %s21 = sadd.s32 %s20, 1
    %s22 = scalar_select %p19, %s20, %s21
    %p25 = pneg %p19
    %p26 = scmp.eq.s32.totalorder %s10, 1
    %p27 = por %p25, %p26
    %p28 = scmp.ne.s32.totalorder %s20, %s23
    %p29 = scmp.eq.s32.totalorder %s10, 0
    %p30 = por %p28, %p29
    %p31 = scmp.ne.s32.totalorder %s20, %s23
    %p32 = scmp.eq.s32.totalorder %s15, 1
    %p33 = por %p31, %p32
    %p34 = scmp.ne.s32.totalorder %s23, %s24
    %p35 = scmp.eq.s32.totalorder %s15, 0
    %p36 = por %p34, %p35
    %p37 = scmp.ne.s32.totalorder %s23, %s24
    %p38 = scmp.eq.s32.totalorder %s16, 1
    %p39 = por %p37, %p38
    %p41 = scmp.ne.s32.totalorder %s24, %s40
    %p42 = scmp.eq.s32.totalorder %s16, 0
    %p43 = por %p41, %p42
    %s45 = sadd.s32 %s44, 1
    %p48 = scmp.eq.s32.totalorder %s10, 1
    %p49 = scmp.ne.s32.totalorder %s44, %s46
    %p50 = scmp.eq.s32.totalorder %s10, 0
    %p51 = por %p49, %p50
    %p52 = scmp.ne.s32.totalorder %s44, %s46
    %p53 = scmp.eq.s32.totalorder %s15, 1
    %p54 = por %p52, %p53
    %p55 = scmp.ne.s32.totalorder %s46, %s47
    %p56 = scmp.eq.s32.totalorder %s15, 0
    %p57 = por %p55, %p56
    %p58 = scmp.ne.s32.totalorder %s46, %s47
    %p59 = scmp.eq.s32.totalorder %s16, 1
    %p60 = por %p58, %p59
    %p62 = scmp.ne.s32.totalorder %s47, %s61
    %p63 = scmp.eq.s32.totalorder %s16, 0
    %p64 = por %p62, %p63
    %s66 = sadd.s32 %s65, 1
    %p69 = scmp.eq.s32.totalorder %s10, 1
    %p70 = scmp.ne.s32.totalorder %s65, %s67
    %p71 = scmp.eq.s32.totalorder %s10, 0
    %p72 = por %p70, %p71
    %p73 = scmp.ne.s32.totalorder %s65, %s67
    %p74 = scmp.eq.s32.totalorder %s15, 1
    %p75 = por %p73, %p74
    %p76 = scmp.ne.s32.totalorder %s67, %s68
    %p77 = scmp.eq.s32.totalorder %s15, 0
    %p78 = por %p76, %p77
    %p79 = scmp.ne.s32.totalorder %s67, %s68
    %p80 = scmp.eq.s32.totalorder %s16, 1
    %p81 = por %p79, %p80
    %p83 = scmp.ne.s32.totalorder %s68, %s82
    %p84 = scmp.eq.s32.totalorder %s16, 0
    %p85 = por %p83, %p84
    %s87 = sadd.s32 %s86, 1
    %p90 = scmp.eq.s32.totalorder %s10, 1
    %p91 = scmp.ne.s32.totalorder %s86, %s88
    %p92 = scmp.eq.s32.totalorder %s10, 0
    %p93 = por %p91, %p92
    %p94 = scmp.ne.s32.totalorder %s86, %s88
    %p95 = scmp.eq.s32.totalorder %s15, 1
    %p96 = por %p94, %p95
    %p97 = scmp.ne.s32.totalorder %s88, %s89
    %p98 = scmp.eq.s32.totalorder %s15, 0
    %p99 = por %p97, %p98
    %p100 = scmp.ne.s32.totalorder %s88, %s89
    %p101 = scmp.eq.s32.totalorder %s16, 1
    %p102 = por %p100, %p101
    %p104 = scmp.ne.s32.totalorder %s89, %s103
    %p105 = scmp.eq.s32.totalorder %s16, 0
    %p106 = por %p104, %p105
    %s107 = ssub.s32 %s10, %s17
    %p108 = scmp.eq.s32.totalorder %s107, 0
    %s110 = sadd.s32 %s109, 1
    %s111 = scalar_select %p108, %s109, %s110
    %p114 = pneg %p108
    %p115 = scmp.eq.s32.totalorder %s10, 1
    %p116 = por %p114, %p115
    %p117 = scmp.ne.s32.totalorder %s109, %s112
    %p118 = scmp.eq.s32.totalorder %s10, 0
    %p119 = por %p117, %p118
    %p120 = scmp.ne.s32.totalorder %s109, %s112
    %p121 = scmp.eq.s32.totalorder %s15, 1
    %p122 = por %p120, %p121
    %p123 = scmp.ne.s32.totalorder %s112, %s113
    %p124 = scmp.eq.s32.totalorder %s15, 0
    %p125 = por %p123, %p124
    %p126 = scmp.ne.s32.totalorder %s112, %s113
    %p127 = scmp.eq.s32.totalorder %s16, 1
    %p128 = por %p126, %p127
    %p130 = scmp.ne.s32.totalorder %s113, %s129
    %p131 = scmp.eq.s32.totalorder %s16, 0
    %p132 = por %p130, %p131
    %p133 = scmp.le.s32.totalorder 1, %s10
    %p134 = scmp.lt.s32.totalorder %s10, 3
    %p135 = pnand %p133, %p134
    %p136 = pneg %p135
    // Predicated region
    $region9: #{conv_block_pallas.1} parent=5 // pred_check
      _
    $region10: #{conv_block_pallas.1} parent=5 // pred_check_branch
      %138 = sbr.rel (%p135) target = $region12
    $region11: #{conv_block_pallas.1} parent=5 // pred_region
      %s139 = ssub.s32 %s10, 1
      // Predicated region
      $region13: #{conv_block_pallas.1} parent=11 // pred_check
        %p140 = pneg %p57
      $region14: #{conv_block_pallas.1} parent=11 // pred_check_branch
        %142 = sbr.rel (%p140) target = $region16
      $region15: #{conv_block_pallas.1} parent=11 // pred_region
        _
      $region16: #{conv_block_pallas.1} parent=11 // pred_fallthru
        _
      // Predicated region
      $region17: #{conv_block_pallas.1} parent=11 // pred_check
        %p143 = pneg %p78
      $region18: #{conv_block_pallas.1} parent=11 // pred_check_branch
        %145 = sbr.rel (%p143) target = $region20
      $region19: #{conv_block_pallas.1} parent=11 // pred_region
        _
      $region20: #{conv_block_pallas.1} parent=11 // pred_fallthru
        _
      // Predicated region
      $region21: #{conv_block_pallas.1} parent=11 // pred_check
        %p146 = pneg %p99
      $region22: #{conv_block_pallas.1} parent=11 // pred_check_branch
        %148 = sbr.rel (%p146) target = $region24
      $region23: #{conv_block_pallas.1} parent=11 // pred_region
        _
      $region24: #{conv_block_pallas.1} parent=11 // pred_fallthru
        _
    $region12: #{conv_block_pallas.1} parent=5 // pred_fallthru
      _
    %p149 = scmp.lt.s32.totalorder %s10, 2
    // Predicated region
    $region25: #{conv_block_pallas.1} parent=5 // pred_check
      %p150 = pneg %p149
    $region26: #{conv_block_pallas.1} parent=5 // pred_check_branch
      %152 = sbr.rel (%p150) target = $region28
    $region27: #{conv_block_pallas.1} parent=5 // pred_region
      // Predicated region
      $region29: #{conv_block_pallas.1} parent=27 // pred_check
        %p153 = pneg %p30
      $region30: #{conv_block_pallas.1} parent=27 // pred_check_branch
        %155 = sbr.rel (%p153) target = $region32
      $region31: #{conv_block_pallas.1} parent=27 // pred_region
        %p156 = scmp.lt.s32.totalorder %s10, 1
        %s157 = scalar_select %p156, %s10, 1
        %s158 = smul.addr %s157, 6
        %s159 = smul.addr %s158, 4
        %s160 = scalar_lea.vmem %s0, %s159
      $region32: #{conv_block_pallas.1} parent=27 // pred_fallthru
        _
    $region28: #{conv_block_pallas.1} parent=5 // pred_fallthru
      _
    %p161 = scmp.le.s32.totalorder 1, %s10
    %p162 = scmp.lt.s32.totalorder %s10, 3
    %p163 = pnand %p161, %p162
    %p164 = pneg %p163
    // Predicated region
    $region33: #{conv_block_pallas.1} parent=5 // pred_check
      _
    $region34: #{conv_block_pallas.1} parent=5 // pred_check_branch
      %166 = sbr.rel (%p163) target = $region36
    $region35: #{conv_block_pallas.1} parent=5 // pred_region
      %s167 = ssub.s32 %s10, 1
      %p168 = scmp.lt.s32.totalorder %s15, 1
      %s169 = scalar_select %p168, %s15, 1
      %s170 = smul.addr %s169, 6
      %s171 = smul.addr %s170, 4
      %s172 = scalar_lea.vmem %s0, %s171
      %p173 = pneg %p36
      %p174 = pneg %p33
      %p175 = pneg %p57
      %p176 = pneg %p54
      %p177 = pneg %p78
      %p178 = pneg %p75
      %p179 = pneg %p99
      %p180 = pneg %p96
      %p181 = pneg %p125
      %p182 = pneg %p122
      %p183 = scmp.lt.s32.totalorder %s15, 1
      %s184 = scalar_select %p183, %s15, 1
      %s185 = smul.addr %s184, 2
      %s186 = smul.addr %s185, 8
      %s187 = scalar_lea.vmem %s4, %s186
      %p188 = scmp.lt.s32.totalorder %s15, 1
      %s189 = scalar_select %p188, %s15, 1
      %s190 = smul.addr %s189, 6
      %s191 = smul.addr %s190, 4
      %s192 = scalar_lea.vmem %s0, %s191
      %p193 = scmp.lt.s32.totalorder %s15, 1
      %s194 = scalar_select %p193, %s15, 1
      %s195 = smul.addr %s194, 2
      %s196 = smul.addr %s195, 8
      %s197 = scalar_lea.vmem %s4, %s196
      %v199 = vld [vmem:[%s3] sm:$0x7]
      %v200 = vld [vmem:[%s192] sm:$0xff]
      %v201 = vld [vmem:[%s192 + $0x8] sm:$0xf]
      %v202 = vld [vmem:[%s192 + $0xc] sm:$0xff]
      %v203 = vld [vmem:[%s192 + $0x14] sm:$0xf]
      %v208 = vunpack.c.l.b16 %v200
      %v209 = vunpack.c.h.b16 %v200
      %v210 = vunpack.c.l.b16 %v201
      %v211 = vunpack.c.l.b16 %v202
      %v212 = vunpack.c.h.b16 %v202
      %v213 = vunpack.c.l.b16 %v203
      %v214 = vpack.c.b16 %v211, %v208
      %v215 = vpack.c.b16 %v212, %v209
      %v216 = vpack.c.b16 %v213, %v210
      %220 = vst [vmem:[#allocation2] sm:$0xff] %v214
      %221 = vst [vmem:[#allocation2 + $0x8] sm:$0xff] %v215
      %vm222 = vcmask 244736
      %223 = vst.msk [vmem:[#allocation2 + $0x10] sm:$0xff] %vm222, %v216
      %v224 = vld [vmem:[%s192] sm:$0xff]
      %v225 = vld [vmem:[%s192 + $0x8] sm:$0xf]
      %v226 = vld [vmem:[%s192 + $0xc] sm:$0xff]
      %v227 = vld [vmem:[%s192 + $0x14] sm:$0xf]
      %v232 = vunpack.c.l.b16 %v224
      %v233 = vunpack.c.h.b16 %v224
      %v234 = vunpack.c.l.b16 %v225
      %v235 = vunpack.c.l.b16 %v226
      %v236 = vunpack.c.h.b16 %v226
      %v237 = vunpack.c.l.b16 %v227
      %v238 = vpack.c.b16 %v235, %v232
      %v239 = vpack.c.b16 %v236, %v233
      %v240 = vpack.c.b16 %v237, %v234
      %241 = vrot.lane.b32.xlu0 %v238, 127
      %v242 = vpop.permute.xlu0 %241
      %243 = vrot.lane.b32.xlu0 %v239, 127
      %v244 = vpop.permute.xlu0 %243
      %245 = vrot.lane.b32.xlu0 %v240, 127
      %v246 = vpop.permute.xlu0 %245
      %vm247 = vcmask 1039360
      %v248 = vsel %vm247, %v242, %v244
      %v249 = vsel %vm247, %v244, %v246
      %253 = vst [vmem:[#allocation2 + $0x18] sm:$0xff] %v248
      %254 = vst [vmem:[#allocation2 + $0x20] sm:$0xff] %v249
      %255 = vst.msk [vmem:[#allocation2 + $0x28] sm:$0xff] %vm222, %v246
      %v256 = vld [vmem:[%s192] sm:$0xff]
      %v257 = vld [vmem:[%s192 + $0x8] sm:$0xf]
      %v258 = vld [vmem:[%s192 + $0xc] sm:$0xff]
      %v259 = vld [vmem:[%s192 + $0x14] sm:$0xf]
      %v264 = vunpack.c.l.b16 %v256
      %v265 = vunpack.c.h.b16 %v256
      %v266 = vunpack.c.l.b16 %v257
      %v267 = vunpack.c.l.b16 %v258
      %v268 = vunpack.c.h.b16 %v258
      %v269 = vunpack.c.l.b16 %v259
      %v270 = vpack.c.b16 %v267, %v264
      %v271 = vpack.c.b16 %v268, %v265
      %v272 = vpack.c.b16 %v269, %v266
      %273 = vrot.lane.b32.xlu0 %v270, 126
      %v274 = vpop.permute.xlu0 %273
      %275 = vrot.lane.b32.xlu0 %v271, 126
      %v276 = vpop.permute.xlu0 %275
      %277 = vrot.lane.b32.xlu0 %v272, 126
      %v278 = vpop.permute.xlu0 %277
      %vm279 = vcmask 1031168
      %v280 = vsel %vm279, %v274, %v276
      %v281 = vsel %vm279, %v276, %v278
      %285 = vst [vmem:[#allocation2 + $0x30] sm:$0xff] %v280
      %286 = vst [vmem:[#allocation2 + $0x38] sm:$0xff] %v281
      %287 = vst.msk [vmem:[#allocation2 + $0x40] sm:$0xff] %vm222, %v278
      %v288 = vld [vmem:[%s192] sm:$0xff]
      %v289 = vld [vmem:[%s192 + $0x8] sm:$0xf]
      %v290 = vld [vmem:[%s192 + $0xc] sm:$0xff]
      %v291 = vld [vmem:[%s192 + $0x14] sm:$0xf]
      %v296 = vunpack.c.l.b16 %v288
      %v297 = vunpack.c.h.b16 %v288
      %v298 = vunpack.c.l.b16 %v289
      %v299 = vunpack.c.l.b16 %v290
      %v300 = vunpack.c.h.b16 %v290
      %v301 = vunpack.c.l.b16 %v291
      %v302 = vpack.c.b16 %v299, %v296
      %v303 = vpack.c.b16 %v300, %v297
      %v304 = vpack.c.b16 %v301, %v298
      %305 = vrot.lane.b32.xlu0 %v302, 110
      %v306 = vpop.permute.xlu0 %305
      %307 = vrot.lane.b32.xlu0 %v303, 110
      %v308 = vpop.permute.xlu0 %307
      %309 = vrot.lane.b32.xlu0 %v304, 110
      %v310 = vpop.permute.xlu0 %309
      %vm311 = vcmask 900096
      %v312 = vsel %vm311, %v306, %v308
      %v313 = vsel %vm311, %v308, %v310
      %317 = vst [vmem:[#allocation2 + $0x48] sm:$0xff] %v312
      %318 = vst [vmem:[#allocation2 + $0x50] sm:$0xff] %v313
      %319 = vst.msk [vmem:[#allocation2 + $0x58] sm:$0xff] %vm222, %v310
      %v320 = vld [vmem:[%s192] sm:$0xff]
      %v321 = vld [vmem:[%s192 + $0x8] sm:$0xf]
      %v322 = vld [vmem:[%s192 + $0xc] sm:$0xff]
      %v323 = vld [vmem:[%s192 + $0x14] sm:$0xf]
      %v328 = vunpack.c.l.b16 %v320
      %v329 = vunpack.c.h.b16 %v320
      %v330 = vunpack.c.l.b16 %v321
      %v331 = vunpack.c.l.b16 %v322
      %v332 = vunpack.c.h.b16 %v322
      %v333 = vunpack.c.l.b16 %v323
      %v334 = vpack.c.b16 %v331, %v328
      %v335 = vpack.c.b16 %v332, %v329
      %v336 = vpack.c.b16 %v333, %v330
      %337 = vrot.lane.b32.xlu0 %v334, 109
      %v338 = vpop.permute.xlu0 %337
      %339 = vrot.lane.b32.xlu0 %v335, 109
      %v340 = vpop.permute.xlu0 %339
      %341 = vrot.lane.b32.xlu0 %v336, 109
      %v342 = vpop.permute.xlu0 %341
      %vm343 = vcmask 891904
      %v344 = vsel %vm343, %v338, %v340
      %v345 = vsel %vm343, %v340, %v342
      %349 = vst [vmem:[#allocation2 + $0x60] sm:$0xff] %v344
      %350 = vst [vmem:[#allocation2 + $0x68] sm:$0xff] %v345
      %351 = vst.msk [vmem:[#allocation2 + $0x70] sm:$0xff] %vm222, %v342
      %v352 = vld [vmem:[%s192] sm:$0xff]
      %v353 = vld [vmem:[%s192 + $0x8] sm:$0xf]
      %v354 = vld [vmem:[%s192 + $0xc] sm:$0xff]
      %v355 = vld [vmem:[%s192 + $0x14] sm:$0xf]
      %v360 = vunpack.c.l.b16 %v352
      %v361 = vunpack.c.h.b16 %v352
      %v362 = vunpack.c.l.b16 %v353
      %v363 = vunpack.c.l.b16 %v354
      %v364 = vunpack.c.h.b16 %v354
      %v365 = vunpack.c.l.b16 %v355
      %v366 = vpack.c.b16 %v363, %v360
      %v367 = vpack.c.b16 %v364, %v361
      %v368 = vpack.c.b16 %v365, %v362
      %369 = vrot.lane.b32.xlu0 %v366, 108
      %v370 = vpop.permute.xlu0 %369
      %371 = vrot.lane.b32.xlu0 %v367, 108
      %v372 = vpop.permute.xlu0 %371
      %373 = vrot.lane.b32.xlu0 %v368, 108
      %v374 = vpop.permute.xlu0 %373
      %vm375 = vcmask 883712
      %v376 = vsel %vm375, %v370, %v372
      %v377 = vsel %vm375, %v372, %v374
      %381 = vst [vmem:[#allocation2 + $0x78] sm:$0xff] %v376
      %382 = vst [vmem:[#allocation2 + $0x80] sm:$0xff] %v377
      %383 = vst.msk [vmem:[#allocation2 + $0x88] sm:$0xff] %vm222, %v374
      %v384 = vld [vmem:[%s192] sm:$0xff]
      %v385 = vld [vmem:[%s192 + $0x8] sm:$0xf]
      %v386 = vld [vmem:[%s192 + $0xc] sm:$0xff]
      %v387 = vld [vmem:[%s192 + $0x14] sm:$0xf]
      %v392 = vunpack.c.l.b16 %v384
      %v393 = vunpack.c.h.b16 %v384
      %v394 = vunpack.c.l.b16 %v385
      %v395 = vunpack.c.l.b16 %v386
      %v396 = vunpack.c.h.b16 %v386
      %v397 = vunpack.c.l.b16 %v387
      %v398 = vpack.c.b16 %v395, %v392
      %v399 = vpack.c.b16 %v396, %v393
      %v400 = vpack.c.b16 %v397, %v394
      %401 = vrot.lane.b32.xlu0 %v398, 92
      %v402 = vpop.permute.xlu0 %401
      %403 = vrot.lane.b32.xlu0 %v399, 92
      %v404 = vpop.permute.xlu0 %403
      %405 = vrot.lane.b32.xlu0 %v400, 92
      %v406 = vpop.permute.xlu0 %405
      %vm407 = vcmask 752640
      %v408 = vsel %vm407, %v402, %v404
      %v409 = vsel %vm407, %v404, %v406
      %413 = vst [vmem:[#allocation2 + $0x90] sm:$0xff] %v408
      %414 = vst [vmem:[#allocation2 + $0x98] sm:$0xff] %v409
      %415 = vst.msk [vmem:[#allocation2 + $0xa0] sm:$0xff] %vm222, %v406
      %v416 = vld [vmem:[%s192] sm:$0xff]
      %v417 = vld [vmem:[%s192 + $0x8] sm:$0xf]
      %v418 = vld [vmem:[%s192 + $0xc] sm:$0xff]
      %v419 = vld [vmem:[%s192 + $0x14] sm:$0xf]
      %v424 = vunpack.c.l.b16 %v416
      %v425 = vunpack.c.h.b16 %v416
      %v426 = vunpack.c.l.b16 %v417
      %v427 = vunpack.c.l.b16 %v418
      %v428 = vunpack.c.h.b16 %v418
      %v429 = vunpack.c.l.b16 %v419
      %v430 = vpack.c.b16 %v427, %v424
      %v431 = vpack.c.b16 %v428, %v425
      %v432 = vpack.c.b16 %v429, %v426
      %433 = vrot.lane.b32.xlu0 %v430, 91
      %v434 = vpop.permute.xlu0 %433
      %435 = vrot.lane.b32.xlu0 %v431, 91
      %v436 = vpop.permute.xlu0 %435
      %437 = vrot.lane.b32.xlu0 %v432, 91
      %v438 = vpop.permute.xlu0 %437
      %vm439 = vcmask 744448
      %v440 = vsel %vm439, %v434, %v436
      %v441 = vsel %vm439, %v436, %v438
      %445 = vst [vmem:[#allocation2 + $0xa8] sm:$0xff] %v440
      %446 = vst [vmem:[#allocation2 + $0xb0] sm:$0xff] %v441
      %447 = vst.msk [vmem:[#allocation2 + $0xb8] sm:$0xff] %vm222, %v438
      %v448 = vld [vmem:[%s192] sm:$0xff]
      %v449 = vld [vmem:[%s192 + $0x8] sm:$0xf]
      %v450 = vld [vmem:[%s192 + $0xc] sm:$0xff]
      %v451 = vld [vmem:[%s192 + $0x14] sm:$0xf]
      %v456 = vunpack.c.l.b16 %v448
      %v457 = vunpack.c.h.b16 %v448
      %v458 = vunpack.c.l.b16 %v449
      %v459 = vunpack.c.l.b16 %v450
      %v460 = vunpack.c.h.b16 %v450
      %v461 = vunpack.c.l.b16 %v451
      %v462 = vpack.c.b16 %v459, %v456
      %v463 = vpack.c.b16 %v460, %v457
      %v464 = vpack.c.b16 %v461, %v458
      %465 = vrot.lane.b32.xlu0 %v462, 90
      %v466 = vpop.permute.xlu0 %465
      %467 = vrot.lane.b32.xlu0 %v463, 90
      %v468 = vpop.permute.xlu0 %467
      %469 = vrot.lane.b32.xlu0 %v464, 90
      %v470 = vpop.permute.xlu0 %469
      %vm471 = vcmask 736256
      %v472 = vsel %vm471, %v466, %v468
      %v473 = vsel %vm471, %v468, %v470
      %477 = vst [vmem:[#allocation2 + $0xc0] sm:$0xff] %v472
      %478 = vst [vmem:[#allocation2 + $0xc8] sm:$0xff] %v473
      %479 = vst.msk [vmem:[#allocation2 + $0xd0] sm:$0xff] %vm222, %v470
      %v480 = vld [vmem:[%s1] sm:$0xff]
      %v481 = vld [vmem:[%s1 + $0x8] sm:$0xff]
      %v482 = vld [vmem:[#allocation2] sm:$0xff]
      %v483 = vld [vmem:[#allocation2 + $0x8] sm:$0xff]
      %v484 = vld [vmem:[#allocation2 + $0x10] sm:$0xff]
      %v485 = vld [vmem:[#allocation2 + $0x18] sm:$0xff]
      %v486 = vld [vmem:[#allocation2 + $0x20] sm:$0xff]
      %v487 = vld [vmem:[#allocation2 + $0x28] sm:$0xff]
      %v488 = vld [vmem:[#allocation2 + $0x30] sm:$0xff]
      %v489 = vld [vmem:[#allocation2 + $0x38] sm:$0xff]
      %v490 = vld [vmem:[#allocation2 + $0x40] sm:$0xff]
      %v491 = vld [vmem:[#allocation2 + $0x48] sm:$0xff]
      %v492 = vld [vmem:[#allocation2 + $0x50] sm:$0xff]
      %v493 = vld [vmem:[#allocation2 + $0x58] sm:$0xff]
      %v494 = vld [vmem:[#allocation2 + $0x60] sm:$0xff]
      %v495 = vld [vmem:[#allocation2 + $0x68] sm:$0xff]
      %v496 = vld [vmem:[#allocation2 + $0x70] sm:$0xff]
      %v497 = vld [vmem:[#allocation2 + $0x78] sm:$0xff]
      %v498 = vld [vmem:[#allocation2 + $0x80] sm:$0xff]
      %v499 = vld [vmem:[#allocation2 + $0x88] sm:$0xff]
      %v500 = vld [vmem:[#allocation2 + $0x90] sm:$0xff]
      %v501 = vld [vmem:[#allocation2 + $0x98] sm:$0xff]
      %v502 = vld [vmem:[#allocation2 + $0xa0] sm:$0xff]
      %v503 = vld [vmem:[#allocation2 + $0xa8] sm:$0xff]
      %v504 = vld [vmem:[#allocation2 + $0xb0] sm:$0xff]
      %v505 = vld [vmem:[#allocation2 + $0xb8] sm:$0xff]
      %v506 = vld [vmem:[#allocation2 + $0xc0] sm:$0xff]
      %v507 = vld [vmem:[#allocation2 + $0xc8] sm:$0xff]
      %v508 = vld [vmem:[#allocation2 + $0xd0] sm:$0xff]
      %v511 = vunpack.c.l.b16 %v480
      %v512 = vunpack.c.h.b16 %v480
      %v513 = vunpack.c.l.b16 %v481
      %v514 = vunpack.c.h.b16 %v481
      %v515 = vpack.c.b16 %v513, %v511
      %v516 = vpack.c.b16 %v514, %v512
      %vm518 = vcmask 130048
      %v520 = vsel %vm518, %v516, 0
      %522 = vmatprep.subr.bf16.mxu0 %v483
      %523 = vmatpush1.bf16.msra.mxu0 %v482
      %524 = vmatprep.subr.bf16.mxu0 %v486
      %525 = vmatpush1.bf16.msra.mxu0 %v485
      %526 = vmatprep.subr.bf16.mxu0 %v489
      %527 = vmatpush1.bf16.msra.mxu0 %v488
      %528 = vmatprep.subr.bf16.mxu0 %v492
      %529 = vmatpush1.bf16.msra.mxu0 %v491
      %530 = vmatprep.subr.bf16.mxu0 %v495
      %531 = vmatpush1.bf16.msra.mxu0 %v494
      %532 = vmatprep.subr.bf16.mxu0 %v498
      %533 = vmatpush1.bf16.msra.mxu0 %v497
      %534 = vmatprep.subr.bf16.mxu0 %v501
      %535 = vmatpush1.bf16.msra.mxu0 %v500
      %536 = vmatprep.subr.bf16.mxu0 %v504
      %537 = vmatpush1.bf16.msra.mxu0 %v503
      %538 = vmatprep.subr.bf16.mxu0 %v507
      %539 = vmatpush1.bf16.msra.mxu0 %v506
      %540 = vmatprep.subr.bf16.mxu0 0
      %541 = vmatpush1.bf16.msra.mxu0 0
      %542 = vmatprep.subr.bf16.mxu0 0
      %543 = vmatpush1.bf16.msra.mxu0 0
      %544 = vmatprep.subr.bf16.mxu0 0
      %545 = vmatpush1.bf16.msra.mxu0 0
      %546 = vmatprep.subr.bf16.mxu0 0
      %547 = vmatpush1.bf16.msra.mxu0 0
      %548 = vmatprep.subr.bf16.mxu0 0
      %549 = vmatpush1.bf16.msra.mxu0 0
      %550 = vmatprep.subr.bf16.mxu0 0
      %551 = vmatpush1.bf16.msra.mxu0 0
      %552 = vmatprep.subr.bf16.mxu0 0
      %553 = vmatpush1.bf16.msra.mxu0 0
      %554 = vmatprep.mubr.bf16.mxu0 %v520
      %555 = vmatmul.mubr.bf16.gmra.mrb[0].mxu0 %v515
      %v556 = vpop.f32.mrb[0].mxu0
      %v557 = vadd.f32 0.0, %v556
      %v558 = vpop.f32.mrb[0].mxu0
      %v559 = vadd.f32 0.0, %v558
      %v560 = vpop.f32.mrb[0].mxu0
      %v561 = vadd.f32 0.0, %v560
      %v562 = vpop.f32.mrb[0].mxu0
      %v563 = vadd.f32 0.0, %v562
      %564 = vdwg.mxu0
      %565 = vmatprep.subr.bf16.mxu0 0
      %566 = vmatpush1.bf16.msra.mxu0 %v484
      %567 = vmatprep.subr.bf16.mxu0 0
      %568 = vmatpush1.bf16.msra.mxu0 %v487
      %569 = vmatprep.subr.bf16.mxu0 0
      %570 = vmatpush1.bf16.msra.mxu0 %v490
      %571 = vmatprep.subr.bf16.mxu0 0
      %572 = vmatpush1.bf16.msra.mxu0 %v493
      %573 = vmatprep.subr.bf16.mxu0 0
      %574 = vmatpush1.bf16.msra.mxu0 %v496
      %575 = vmatprep.subr.bf16.mxu0 0
      %576 = vmatpush1.bf16.msra.mxu0 %v499
      %577 = vmatprep.subr.bf16.mxu0 0
      %578 = vmatpush1.bf16.msra.mxu0 %v502
      %579 = vmatprep.subr.bf16.mxu0 0
      %580 = vmatpush1.bf16.msra.mxu0 %v505
      %581 = vmatprep.subr.bf16.mxu0 0
      %582 = vmatpush1.bf16.msra.mxu0 %v508
      %583 = vmatprep.subr.bf16.mxu0 0
      %584 = vmatpush1.bf16.msra.mxu0 0
      %585 = vmatprep.subr.bf16.mxu0 0
      %586 = vmatpush1.bf16.msra.mxu0 0
      %587 = vmatprep.subr.bf16.mxu0 0
      %588 = vmatpush1.bf16.msra.mxu0 0
      %589 = vmatprep.subr.bf16.mxu0 0
      %590 = vmatpush1.bf16.msra.mxu0 0
      %591 = vmatprep.subr.bf16.mxu0 0
      %592 = vmatpush1.bf16.msra.mxu0 0
      %593 = vmatprep.subr.bf16.mxu0 0
      %594 = vmatpush1.bf16.msra.mxu0 0
      %595 = vmatprep.subr.bf16.mxu0 0
      %596 = vmatpush1.bf16.msra.mxu0 0
      %597 = vmatprep.mubr.bf16.mxu0 %v520
      %598 = vmatmul.mubr.bf16.gmra.mrb[0].mxu0 %v515
      %v599 = vpop.f32.mrb[0].mxu0
      %v600 = vadd.f32 0.0, %v599
      %v601 = vpop.f32.mrb[0].mxu0
      %v602 = vpop.f32.mrb[0].mxu0
      %v603 = vadd.f32 0.0, %v602
      %v604 = vpop.f32.mrb[0].mxu0
      %605 = vdwg.mxu0
      %v607 = vlaneseq
      %v608 = vshrl.u32 %v607, 7
      %v609 = vsub.s32 0, %v608
      %v610 = vrot.slane %v199, %v609
      %v611 = vlaneseq
      %v612 = vshrl.u32 %v611, 7
      %v613 = vsub.s32 1, %v612
      %v614 = vrot.slane %v199, %v613
      %v615 = vlaneseq
      %v616 = vshrl.u32 %v615, 7
      %v617 = vsub.s32 2, %v616
      %v618 = vrot.slane %v199, %v617
      %v622 = vmul.f32 %v557, %v610
      %v623 = vmul.f32 %v559, %v614
      %v624 = vmul.f32 %v600, %v618
      %v625 = vmul.f32 %v561, %v610
      %v626 = vmul.f32 %v563, %v614
      %v627 = vmul.f32 %v603, %v618
      %v628 = vadd.f32 %v622, %v623
      %v629 = vsel %vm222, %v624, 0.0
      %v630 = vadd.f32 %v628, %v629
      %631 = vadd.xlane.f32.xlu0 %v630
      %v632 = vpop.xlane.xlu0 %631
      %v633 = vadd.f32 %v625, %v626
      %v634 = vsel %vm222, %v627, 0.0
      %v635 = vadd.f32 %v633, %v634
      %636 = vadd.xlane.f32.xlu0 %v635
      %v637 = vpop.xlane.xlu0 %636
      %v638 = vmul.f32 %v622, %v557
      %v639 = vmul.f32 %v623, %v559
      %v640 = vmul.f32 %v624, %v600
      %v641 = vmul.f32 %v625, %v561
      %v642 = vmul.f32 %v626, %v563
      %v643 = vmul.f32 %v627, %v603
      %v644 = vadd.f32 %v638, %v639
      %v645 = vsel %vm222, %v640, 0.0
      %v646 = vadd.f32 %v644, %v645
      %647 = vadd.xlane.f32.xlu0 %v646
      %v648 = vpop.xlane.xlu0 %647
      %v649 = vadd.f32 %v641, %v642
      %v650 = vsel %vm222, %v643, 0.0
      %v651 = vadd.f32 %v649, %v650
      %652 = vadd.xlane.f32.xlu0 %v651
      %v653 = vpop.xlane.xlu0 %652
      %v654 = vmul.f32 %v632, 0.00390625
      %v655 = vmul.f32 %v637, 0.00390625
      %v656 = vmul.f32 %v648, 0.00390625
      %v657 = vmul.f32 %v653, 0.00390625
      %v658 = vmul.f32 %v654, %v654
      %v659 = vmul.f32 %v655, %v655
      %v660 = vsub.f32 %v656, %v658
      %v661 = vsub.f32 %v657, %v659
      %v662 = vmax.f32 %v660, 0.0
      %v663 = vmax.f32 %v661, 0.0
      %v664 = vsub.f32 %v557, %v654
      %v665 = vsub.f32 %v559, %v654
      %v666 = vsub.f32 %v600, %v654
      %v667 = vsub.f32 %v561, %v655
      %v668 = vsub.f32 %v563, %v655
      %v669 = vsub.f32 %v603, %v655
      %v670 = vadd.f32 %v662, 1e-05
      %v671 = vadd.f32 %v663, 1e-05
      %v672 = vrsqrt.pop %v670
      %v673 = vrsqrt.pop %v671
      %v674 = vmul.f32 %v664, %v672
      %v675 = vmul.f32 %v665, %v672
      %v676 = vmul.f32 %v666, %v672
      %v677 = vmul.f32 %v667, %v673
      %v678 = vmul.f32 %v668, %v673
      %v679 = vmul.f32 %v669, %v673
      %vm680 = vcmp.ge.f32.partialorder %v674, 0.0
      %vm681 = vcmp.ge.f32.partialorder %v675, 0.0
      %vm682 = vcmp.ge.f32.partialorder %v676, 0.0
      %vm683 = vcmp.ge.f32.partialorder %v677, 0.0
      %vm684 = vcmp.ge.f32.partialorder %v678, 0.0
      %vm685 = vcmp.ge.f32.partialorder %v679, 0.0
      %v686 = vmul.f32 %v674, 0.2
      %v687 = vmul.f32 %v675, 0.2
      %v688 = vmul.f32 %v676, 0.2
      %v689 = vmul.f32 %v677, 0.2
      %v690 = vmul.f32 %v678, 0.2
      %v691 = vmul.f32 %v679, 0.2
      %v692 = vsel %vm680, %v674, %v686
      %v693 = vsel %vm681, %v675, %v687
      %v694 = vsel %vm682, %v676, %v688
      %v695 = vsel %vm683, %v677, %v689
      %v696 = vsel %vm684, %v678, %v690
      %v697 = vsel %vm685, %v679, %v691
      %vm698 = vcmask 154624
      %699 = vst.msk [vmem:[#allocation3] sm:$0xff] %vm698, 0
      %vm700 = vcmask 556424
      %701 = vst.msk [vmem:[#allocation3 + $0x10] sm:$0xff] %vm700, 0
      %v702 = vmul.f32 %v692, %v610
      %v703 = vmul.f32 %v693, %v614
      %v704 = vmul.f32 %v694, %v618
      %v705 = vmul.f32 %v695, %v610
      %v706 = vmul.f32 %v696, %v614
      %v707 = vmul.f32 %v697, %v618
      %v708 = vpack.c.bf16 %v705, %v702
      %v709 = vpack.c.bf16 %v706, %v703
      %v710 = vpack.c.bf16 %v707, %v704
      %714 = vrot.lane.b32.xlu0 %v708, 19
      %v715 = vpop.permute.xlu0 %714
      %716 = vrot.lane.b32.xlu0 %v709, 19
      %v717 = vpop.permute.xlu0 %716
      %718 = vrot.lane.b32.xlu0 %v710, 19
      %v719 = vpop.permute.xlu0 %718
      %vm720 = vcmask 154624
      %v721 = vsel %vm720, %v715, %v717
      %v722 = vsel %vm720, %v717, %v719
      %vm726 = vcmask 1047704
      %727 = vst.msk [vmem:[#allocation3] sm:$0xff] %vm726, %v715
      %728 = vst [vmem:[#allocation3 + $0x8] sm:$0xff] %v721
      %vm729 = vcmask 400384
      %730 = vst.msk [vmem:[#allocation3 + $0x10] sm:$0xff] %vm729, %v722
      %v731 = vld [vmem:[#allocation3] sm:$0xff]
      %v732 = vld [vmem:[#allocation3 + $0x8] sm:$0xff]
      %v733 = vld [vmem:[#allocation3 + $0x10] sm:$0xff]
      %734 = vst [vmem:[#allocation4] sm:$0xff] %v731
      %735 = vst [vmem:[#allocation4 + $0x8] sm:$0xff] %v732
      %736 = vst.msk [vmem:[#allocation4 + $0x10] sm:$0xff] %vm222, %v733
      %v737 = vld [vmem:[#allocation3] sm:$0xff]
      %v738 = vld [vmem:[#allocation3 + $0x8] sm:$0xff]
      %v739 = vld [vmem:[#allocation3 + $0x10] sm:$0xff]
      %743 = vrot.lane.b32.xlu0 %v737, 127
      %v744 = vpop.permute.xlu0 %743
      %745 = vrot.lane.b32.xlu0 %v738, 127
      %v746 = vpop.permute.xlu0 %745
      %747 = vrot.lane.b32.xlu0 %v739, 127
      %v748 = vpop.permute.xlu0 %747
      %v749 = vsel %vm247, %v744, %v746
      %v750 = vsel %vm247, %v746, %v748
      %754 = vst [vmem:[#allocation4 + $0x18] sm:$0xff] %v749
      %755 = vst [vmem:[#allocation4 + $0x20] sm:$0xff] %v750
      %756 = vst.msk [vmem:[#allocation4 + $0x28] sm:$0xff] %vm222, %v748
      %v757 = vld [vmem:[#allocation3] sm:$0xff]
      %v758 = vld [vmem:[#allocation3 + $0x8] sm:$0xff]
      %v759 = vld [vmem:[#allocation3 + $0x10] sm:$0xff]
      %763 = vrot.lane.b32.xlu0 %v757, 126
      %v764 = vpop.permute.xlu0 %763
      %765 = vrot.lane.b32.xlu0 %v758, 126
      %v766 = vpop.permute.xlu0 %765
      %767 = vrot.lane.b32.xlu0 %v759, 126
      %v768 = vpop.permute.xlu0 %767
      %v769 = vsel %vm279, %v764, %v766
      %v770 = vsel %vm279, %v766, %v768
      %774 = vst [vmem:[#allocation4 + $0x30] sm:$0xff] %v769
      %775 = vst [vmem:[#allocation4 + $0x38] sm:$0xff] %v770
      %776 = vst.msk [vmem:[#allocation4 + $0x40] sm:$0xff] %vm222, %v768
      %v777 = vld [vmem:[#allocation3] sm:$0xff]
      %v778 = vld [vmem:[#allocation3 + $0x8] sm:$0xff]
      %v779 = vld [vmem:[#allocation3 + $0x10] sm:$0xff]
      %783 = vrot.lane.b32.xlu0 %v777, 110
      %v784 = vpop.permute.xlu0 %783
      %785 = vrot.lane.b32.xlu0 %v778, 110
      %v786 = vpop.permute.xlu0 %785
      %787 = vrot.lane.b32.xlu0 %v779, 110
      %v788 = vpop.permute.xlu0 %787
      %v789 = vsel %vm311, %v784, %v786
      %v790 = vsel %vm311, %v786, %v788
      %794 = vst [vmem:[#allocation4 + $0x48] sm:$0xff] %v789
      %795 = vst [vmem:[#allocation4 + $0x50] sm:$0xff] %v790
      %796 = vst.msk [vmem:[#allocation4 + $0x58] sm:$0xff] %vm222, %v788
      %v797 = vld [vmem:[#allocation3] sm:$0xff]
      %v798 = vld [vmem:[#allocation3 + $0x8] sm:$0xff]
      %v799 = vld [vmem:[#allocation3 + $0x10] sm:$0xff]
      %803 = vrot.lane.b32.xlu0 %v797, 109
      %v804 = vpop.permute.xlu0 %803
      %805 = vrot.lane.b32.xlu0 %v798, 109
      %v806 = vpop.permute.xlu0 %805
      %807 = vrot.lane.b32.xlu0 %v799, 109
      %v808 = vpop.permute.xlu0 %807
      %v809 = vsel %vm343, %v804, %v806
      %v810 = vsel %vm343, %v806, %v808
      %814 = vst [vmem:[#allocation4 + $0x60] sm:$0xff] %v809
      %815 = vst [vmem:[#allocation4 + $0x68] sm:$0xff] %v810
      %816 = vst.msk [vmem:[#allocation4 + $0x70] sm:$0xff] %vm222, %v808
      %v817 = vld [vmem:[#allocation3] sm:$0xff]
      %v818 = vld [vmem:[#allocation3 + $0x8] sm:$0xff]
      %v819 = vld [vmem:[#allocation3 + $0x10] sm:$0xff]
      %823 = vrot.lane.b32.xlu0 %v817, 108
      %v824 = vpop.permute.xlu0 %823
      %825 = vrot.lane.b32.xlu0 %v818, 108
      %v826 = vpop.permute.xlu0 %825
      %827 = vrot.lane.b32.xlu0 %v819, 108
      %v828 = vpop.permute.xlu0 %827
      %v829 = vsel %vm375, %v824, %v826
      %v830 = vsel %vm375, %v826, %v828
      %834 = vst [vmem:[#allocation4 + $0x78] sm:$0xff] %v829
      %835 = vst [vmem:[#allocation4 + $0x80] sm:$0xff] %v830
      %836 = vst.msk [vmem:[#allocation4 + $0x88] sm:$0xff] %vm222, %v828
      %v837 = vld [vmem:[#allocation3] sm:$0xff]
      %v838 = vld [vmem:[#allocation3 + $0x8] sm:$0xff]
      %v839 = vld [vmem:[#allocation3 + $0x10] sm:$0xff]
      %843 = vrot.lane.b32.xlu0 %v837, 92
      %v844 = vpop.permute.xlu0 %843
      %845 = vrot.lane.b32.xlu0 %v838, 92
      %v846 = vpop.permute.xlu0 %845
      %847 = vrot.lane.b32.xlu0 %v839, 92
      %v848 = vpop.permute.xlu0 %847
      %v849 = vsel %vm407, %v844, %v846
      %v850 = vsel %vm407, %v846, %v848
      %854 = vst [vmem:[#allocation4 + $0x90] sm:$0xff] %v849
      %855 = vst [vmem:[#allocation4 + $0x98] sm:$0xff] %v850
      %856 = vst.msk [vmem:[#allocation4 + $0xa0] sm:$0xff] %vm222, %v848
      %v857 = vld [vmem:[#allocation3] sm:$0xff]
      %v858 = vld [vmem:[#allocation3 + $0x8] sm:$0xff]
      %v859 = vld [vmem:[#allocation3 + $0x10] sm:$0xff]
      %863 = vrot.lane.b32.xlu0 %v857, 91
      %v864 = vpop.permute.xlu0 %863
      %865 = vrot.lane.b32.xlu0 %v858, 91
      %v866 = vpop.permute.xlu0 %865
      %867 = vrot.lane.b32.xlu0 %v859, 91
      %v868 = vpop.permute.xlu0 %867
      %v869 = vsel %vm439, %v864, %v866
      %v870 = vsel %vm439, %v866, %v868
      %874 = vst [vmem:[#allocation4 + $0xa8] sm:$0xff] %v869
      %875 = vst [vmem:[#allocation4 + $0xb0] sm:$0xff] %v870
      %876 = vst.msk [vmem:[#allocation4 + $0xb8] sm:$0xff] %vm222, %v868
      %v877 = vld [vmem:[#allocation3] sm:$0xff]
      %v878 = vld [vmem:[#allocation3 + $0x8] sm:$0xff]
      %v879 = vld [vmem:[#allocation3 + $0x10] sm:$0xff]
      %883 = vrot.lane.b32.xlu0 %v877, 90
      %v884 = vpop.permute.xlu0 %883
      %885 = vrot.lane.b32.xlu0 %v878, 90
      %v886 = vpop.permute.xlu0 %885
      %887 = vrot.lane.b32.xlu0 %v879, 90
      %v888 = vpop.permute.xlu0 %887
      %v889 = vsel %vm471, %v884, %v886
      %v890 = vsel %vm471, %v886, %v888
      %894 = vst [vmem:[#allocation4 + $0xc0] sm:$0xff] %v889
      %895 = vst [vmem:[#allocation4 + $0xc8] sm:$0xff] %v890
      %896 = vst.msk [vmem:[#allocation4 + $0xd0] sm:$0xff] %vm222, %v888
      %v897 = vld [vmem:[%s2] sm:$0xff]
      %v898 = vld [vmem:[%s2 + $0x8] sm:$0xff]
      %v899 = vld [vmem:[#allocation4] sm:$0xff]
      %v900 = vld [vmem:[#allocation4 + $0x8] sm:$0xff]
      %v901 = vld [vmem:[#allocation4 + $0x10] sm:$0xff]
      %v902 = vld [vmem:[#allocation4 + $0x18] sm:$0xff]
      %v903 = vld [vmem:[#allocation4 + $0x20] sm:$0xff]
      %v904 = vld [vmem:[#allocation4 + $0x28] sm:$0xff]
      %v905 = vld [vmem:[#allocation4 + $0x30] sm:$0xff]
      %v906 = vld [vmem:[#allocation4 + $0x38] sm:$0xff]
      %v907 = vld [vmem:[#allocation4 + $0x40] sm:$0xff]
      %v908 = vld [vmem:[#allocation4 + $0x48] sm:$0xff]
      %v909 = vld [vmem:[#allocation4 + $0x50] sm:$0xff]
      %v910 = vld [vmem:[#allocation4 + $0x58] sm:$0xff]
      %v911 = vld [vmem:[#allocation4 + $0x60] sm:$0xff]
      %v912 = vld [vmem:[#allocation4 + $0x68] sm:$0xff]
      %v913 = vld [vmem:[#allocation4 + $0x70] sm:$0xff]
      %v914 = vld [vmem:[#allocation4 + $0x78] sm:$0xff]
      %v915 = vld [vmem:[#allocation4 + $0x80] sm:$0xff]
      %v916 = vld [vmem:[#allocation4 + $0x88] sm:$0xff]
      %v917 = vld [vmem:[#allocation4 + $0x90] sm:$0xff]
      %v918 = vld [vmem:[#allocation4 + $0x98] sm:$0xff]
      %v919 = vld [vmem:[#allocation4 + $0xa0] sm:$0xff]
      %v920 = vld [vmem:[#allocation4 + $0xa8] sm:$0xff]
      %v921 = vld [vmem:[#allocation4 + $0xb0] sm:$0xff]
      %v922 = vld [vmem:[#allocation4 + $0xb8] sm:$0xff]
      %v923 = vld [vmem:[#allocation4 + $0xc0] sm:$0xff]
      %v924 = vld [vmem:[#allocation4 + $0xc8] sm:$0xff]
      %v925 = vld [vmem:[#allocation4 + $0xd0] sm:$0xff]
      %v928 = vunpack.c.l.b16 %v897
      %v929 = vunpack.c.h.b16 %v897
      %v930 = vunpack.c.l.b16 %v898
      %v931 = vunpack.c.h.b16 %v898
      %v932 = vpack.c.b16 %v930, %v928
      %v933 = vpack.c.b16 %v931, %v929
      %v936 = vsel %vm518, %v933, 0
      %938 = vmatprep.subr.bf16.mxu0 %v900
      %939 = vmatpush1.bf16.msra.mxu0 %v899
      %940 = vmatprep.subr.bf16.mxu0 %v903
      %941 = vmatpush1.bf16.msra.mxu0 %v902
      %942 = vmatprep.subr.bf16.mxu0 %v906
      %943 = vmatpush1.bf16.msra.mxu0 %v905
      %944 = vmatprep.subr.bf16.mxu0 %v909
      %945 = vmatpush1.bf16.msra.mxu0 %v908
      %946 = vmatprep.subr.bf16.mxu0 %v912
      %947 = vmatpush1.bf16.msra.mxu0 %v911
      %948 = vmatprep.subr.bf16.mxu0 %v915
      %949 = vmatpush1.bf16.msra.mxu0 %v914
      %950 = vmatprep.subr.bf16.mxu0 %v918
      %951 = vmatpush1.bf16.msra.mxu0 %v917
      %952 = vmatprep.subr.bf16.mxu0 %v921
      %953 = vmatpush1.bf16.msra.mxu0 %v920
      %954 = vmatprep.subr.bf16.mxu0 %v924
      %955 = vmatpush1.bf16.msra.mxu0 %v923
      %956 = vmatprep.subr.bf16.mxu0 0
      %957 = vmatpush1.bf16.msra.mxu0 0
      %958 = vmatprep.subr.bf16.mxu0 0
      %959 = vmatpush1.bf16.msra.mxu0 0
      %960 = vmatprep.subr.bf16.mxu0 0
      %961 = vmatpush1.bf16.msra.mxu0 0
      %962 = vmatprep.subr.bf16.mxu0 0
      %963 = vmatpush1.bf16.msra.mxu0 0
      %964 = vmatprep.subr.bf16.mxu0 0
      %965 = vmatpush1.bf16.msra.mxu0 0
      %966 = vmatprep.subr.bf16.mxu0 0
      %967 = vmatpush1.bf16.msra.mxu0 0
      %968 = vmatprep.subr.bf16.mxu0 0
      %969 = vmatpush1.bf16.msra.mxu0 0
      %970 = vmatprep.mubr.bf16.mxu0 %v936
      %971 = vmatmul.mubr.bf16.gmra.mrb[0].mxu0 %v932
      %v972 = vpop.f32.mrb[0].mxu0
      %v973 = vadd.f32 0.0, %v972
      %v974 = vpop.f32.mrb[0].mxu0
      %v975 = vadd.f32 0.0, %v974
      %v976 = vpop.f32.mrb[0].mxu0
      %v977 = vpop.f32.mrb[0].mxu0
      %978 = vdwg.mxu0
      %979 = vmatprep.subr.bf16.mxu0 0
      %980 = vmatpush1.bf16.msra.mxu0 %v901
      %981 = vmatprep.subr.bf16.mxu0 0
      %982 = vmatpush1.bf16.msra.mxu0 %v904
      %983 = vmatprep.subr.bf16.mxu0 0
      %984 = vmatpush1.bf16.msra.mxu0 %v907
      %985 = vmatprep.subr.bf16.mxu0 0
      %986 = vmatpush1.bf16.msra.mxu0 %v910
      %987 = vmatprep.subr.bf16.mxu0 0
      %988 = vmatpush1.bf16.msra.mxu0 %v913
      %989 = vmatprep.subr.bf16.mxu0 0
      %990 = vmatpush1.bf16.msra.mxu0 %v916
      %991 = vmatprep.subr.bf16.mxu0 0
      %992 = vmatpush1.bf16.msra.mxu0 %v919
      %993 = vmatprep.subr.bf16.mxu0 0
      %994 = vmatpush1.bf16.msra.mxu0 %v922
      %995 = vmatprep.subr.bf16.mxu0 0
      %996 = vmatpush1.bf16.msra.mxu0 %v925
      %997 = vmatprep.subr.bf16.mxu0 0
      %998 = vmatpush1.bf16.msra.mxu0 0
      %999 = vmatprep.subr.bf16.mxu0 0
      %1000 = vmatpush1.bf16.msra.mxu0 0
      %1001 = vmatprep.subr.bf16.mxu0 0
      %1002 = vmatpush1.bf16.msra.mxu0 0
      %1003 = vmatprep.subr.bf16.mxu0 0
      %1004 = vmatpush1.bf16.msra.mxu0 0
      %1005 = vmatprep.subr.bf16.mxu0 0
      %1006 = vmatpush1.bf16.msra.mxu0 0
      %1007 = vmatprep.subr.bf16.mxu0 0
      %1008 = vmatpush1.bf16.msra.mxu0 0
      %1009 = vmatprep.subr.bf16.mxu0 0
      %1010 = vmatpush1.bf16.msra.mxu0 0
      %1011 = vmatprep.mubr.bf16.mxu0 %v936
      %1012 = vmatmul.mubr.bf16.gmra.mrb[0].mxu0 %v932
      %v1013 = vpop.f32.mrb[0].mxu0
      %v1014 = vadd.f32 0.0, %v1013
      %v1015 = vpop.f32.mrb[0].mxu0
      %v1016 = vpop.f32.mrb[0].mxu0
      %v1017 = vpop.f32.mrb[0].mxu0
      %1018 = vdwg.mxu0
      %v1019 = vmul.f32 %v973, %v610
      %v1020 = vmul.f32 %v975, %v614
      %v1021 = vmul.f32 %v1014, %v618
      %v1022 = vadd.f32 %v1019, %v1020
      %v1023 = vsel %vm222, %v1021, 0.0
      %v1024 = vadd.f32 %v1022, %v1023
      %1025 = vadd.xlane.f32.xlu0 %v1024
      %v1026 = vpop.xlane.xlu0 %1025
      %v1027 = vmul.f32 %v1019, %v973
      %v1028 = vmul.f32 %v1020, %v975
      %v1029 = vmul.f32 %v1021, %v1014
      %v1030 = vadd.f32 %v1027, %v1028
      %v1031 = vsel %vm222, %v1029, 0.0
      %v1032 = vadd.f32 %v1030, %v1031
      %1033 = vadd.xlane.f32.xlu0 %v1032
      %v1034 = vpop.xlane.xlu0 %1033
      %v1035 = vmul.f32 %v1026, 0.00390625
      %v1036 = vmul.f32 %v1034, 0.00390625
      %v1037 = vmul.f32 %v1035, %v1035
      %v1038 = vsub.f32 %v1036, %v1037
      %v1039 = vmax.f32 %v1038, 0.0
      %v1040 = vsub.f32 %v973, %v1035
      %v1041 = vsub.f32 %v975, %v1035
      %v1042 = vsub.f32 %v1014, %v1035
      %v1043 = vadd.f32 %v1039, 1e-05
      %v1044 = vrsqrt.pop %v1043
      %v1045 = vmul.f32 %v1040, %v1044
      %v1046 = vmul.f32 %v1041, %v1044
      %v1047 = vmul.f32 %v1042, %v1044
      %vm1048 = vcmp.ge.f32.partialorder %v1045, 0.0
      %vm1049 = vcmp.ge.f32.partialorder %v1046, 0.0
      %vm1050 = vcmp.ge.f32.partialorder %v1047, 0.0
      %v1051 = vmul.f32 %v1045, 0.2
      %v1052 = vmul.f32 %v1046, 0.2
      %v1053 = vmul.f32 %v1047, 0.2
      %v1054 = vsel %vm1048, %v1045, %v1051
      %v1055 = vsel %vm1049, %v1046, %v1052
      %v1056 = vsel %vm1050, %v1047, %v1053
      %1057 = vst.msk [vmem:[%s197] sm:$0xff] %vm518, %v1054
      %1059 = vrot.lane.b32.xlu0 %v1054, 126
      %v1060 = vpop.permute.xlu0 %1059
      %vm1062 = vcmask 261248
      %1063 = vst.msk [vmem:[%s197] sm:$0xff] %vm1062, %v1060
      %1064 = vrot.lane.b32.xlu0 %v1054, 124
      %v1065 = vpop.permute.xlu0 %1064
      %vm1067 = vcmask 392448
      %1068 = vst.msk [vmem:[%s197] sm:$0xff] %vm1067, %v1065
      %1069 = vrot.lane.b32.xlu0 %v1054, 122
      %v1070 = vpop.permute.xlu0 %1069
      %vm1072 = vcmask 523648
      %1073 = vst.msk [vmem:[%s197] sm:$0xff] %vm1072, %v1070
      %1074 = vrot.lane.b32.xlu0 %v1054, 120
      %v1075 = vpop.permute.xlu0 %1074
      %vm1077 = vcmask 654848
      %1078 = vst.msk [vmem:[%s197] sm:$0xff] %vm1077, %v1075
      %1079 = vrot.lane.b32.xlu0 %v1054, 118
      %v1080 = vpop.permute.xlu0 %1079
      %vm1082 = vcmask 786048
      %1083 = vst.msk [vmem:[%s197] sm:$0xff] %vm1082, %v1080
      %1084 = vrot.lane.b32.xlu0 %v1054, 116
      %v1085 = vpop.permute.xlu0 %1084
      %vm1087 = vcmask 917248
      %1088 = vst.msk [vmem:[%s197] sm:$0xff] %vm1087, %v1085
      %1090 = vrot.lane.b32.xlu0 %v1054, 114
      %v1091 = vpop.permute.xlu0 %1090
      %1092 = vrot.lane.b32.xlu0 %v1055, 114
      %v1093 = vpop.permute.xlu0 %1092
      %vm1094 = vcmask 932864
      %v1095 = vsel %vm1094, %v1091, %v1093
      %vm1097 = vcmask 1048448
      %1098 = vst.msk [vmem:[%s197] sm:$0xff] %vm1097, %v1095
      %1099 = vrot.lane.b32.xlu0 %v1055, 112
      %v1100 = vpop.permute.xlu0 %1099
      %1102 = vst.msk [vmem:[%s197 + $0x8] sm:$0xff] %vm518, %v1100
      %1103 = vrot.lane.b32.xlu0 %v1055, 110
      %v1104 = vpop.permute.xlu0 %1103
      %1106 = vst.msk [vmem:[%s197 + $0x8] sm:$0xff] %vm1062, %v1104
      %1107 = vrot.lane.b32.xlu0 %v1055, 108
      %v1108 = vpop.permute.xlu0 %1107
      %1110 = vst.msk [vmem:[%s197 + $0x8] sm:$0xff] %vm1067, %v1108
      %1111 = vrot.lane.b32.xlu0 %v1055, 106
      %v1112 = vpop.permute.xlu0 %1111
      %1114 = vst.msk [vmem:[%s197 + $0x8] sm:$0xff] %vm1072, %v1112
      %1115 = vrot.lane.b32.xlu0 %v1055, 104
      %v1116 = vpop.permute.xlu0 %1115
      %1118 = vst.msk [vmem:[%s197 + $0x8] sm:$0xff] %vm1077, %v1116
      %1119 = vrot.lane.b32.xlu0 %v1055, 102
      %v1120 = vpop.permute.xlu0 %1119
      %1122 = vst.msk [vmem:[%s197 + $0x8] sm:$0xff] %vm1082, %v1120
      %1124 = vrot.lane.b32.xlu0 %v1055, 100
      %v1125 = vpop.permute.xlu0 %1124
      %1126 = vrot.lane.b32.xlu0 %v1056, 100
      %v1127 = vpop.permute.xlu0 %1126
      %vm1128 = vcmask 818176
      %v1129 = vsel %vm1128, %v1125, %v1127
      %1131 = vst.msk [vmem:[%s197 + $0x8] sm:$0xff] %vm1087, %v1129
      %1132 = vrot.lane.b32.xlu0 %v1056, 98
      %v1133 = vpop.permute.xlu0 %1132
      %1135 = vst.msk [vmem:[%s197 + $0x8] sm:$0xff] %vm1097, %v1133
      %p1136 = scmp.lt.s32.totalorder %s15, 1
      %s1137 = scalar_select %p1136, %s15, 1
      %s1138 = smul.addr %s1137, 2
      %s1139 = smul.addr %s1138, 8
      %s1140 = scalar_lea.vmem %s4, %s1139
      // Predicated region
      $region37: #{conv_block_pallas.1} parent=35 // pred_check
        %p1141 = pneg %p122
      $region38: #{conv_block_pallas.1} parent=35 // pred_check_branch
        %1143 = sbr.rel (%p1141) target = $region40
      $region39: #{conv_block_pallas.1} parent=35 // pred_region
        _
      $region40: #{conv_block_pallas.1} parent=35 // pred_fallthru
        _
    $region36: #{conv_block_pallas.1} parent=5 // pred_fallthru
      _
    %p1144 = scmp.le.s32.totalorder 2, %s10
    // Predicated region
    $region41: #{conv_block_pallas.1} parent=5 // pred_check
      %p1145 = pneg %p1144
    $region42: #{conv_block_pallas.1} parent=5 // pred_check_branch
      %1147 = sbr.rel (%p1145) target = $region44
    $region43: #{conv_block_pallas.1} parent=5 // pred_region
      %s1148 = ssub.s32 %s10, 2
      // Predicated region
      $region45: #{conv_block_pallas.1} parent=43 // pred_check
        %p1149 = pneg %p128
      $region46: #{conv_block_pallas.1} parent=43 // pred_check_branch
        %1151 = sbr.rel (%p1149) target = $region48
      $region47: #{conv_block_pallas.1} parent=43 // pred_region
        %p1152 = scmp.lt.s32.totalorder %s16, 1
        %s1153 = scalar_select %p1152, %s16, 1
        %s1154 = smul.addr %s1153, 2
        %s1155 = smul.addr %s1154, 8
        %s1156 = scalar_lea.vmem %s4, %s1155
      $region48: #{conv_block_pallas.1} parent=43 // pred_fallthru
        _
    $region44: #{conv_block_pallas.1} parent=5 // pred_fallthru
      _
  $region6: #{conv_block_pallas.1} parent=0 // loop_footer
    %s14 = sadd.s32 1, %s10
  $region7: #{conv_block_pallas.1} parent=0 // loop_footer_branch
    %9 = sbr.rel target = $region3
  $region8: #{conv_block_pallas.1} parent=0 // loop_exit
    _

</llo_original>
